<compile_context>
chip_gen: v5e
topology: v5e:2x2
jax: 0.10.0
libtpu: 0.0.40
codegen_flags: <defaults>
</compile_context>

<pallas_src>
import jax
import jax.numpy as jnp
from jax.experimental import pallas as pl
from jax.experimental.pallas import tpu as pltpu  # noqa: F401  (not needed at this size)

SELU_ALPHA = 1.6732632423543772848170429916717
SELU_SCALE = 1.0507009873554804934193349852946
BN_EPS = 1e-5


def _selu(x):
    return SELU_SCALE * jnp.where(x > 0, x, SELU_ALPHA * (jnp.exp(x) - 1.0))


# ---------------------------------------------------------------------------
# Fused Pallas kernel
# ---------------------------------------------------------------------------
def _make_fused_kernel(kh):
    """Whole DownsamplingBlock2D forward on VMEM-resident (rows, W*C) slabs."""

    def kernel(x_ref, r1_ref, rf_ref,
               we_ref, be_ref, w1_ref, b1_ref, w2_ref, b2_ref, wf_ref, bf_ref,
               bn1_ref, bn2_ref, bnf_ref, p1_ref, pf_ref, o_ref):

        def dot(a, b):
            return jnp.dot(a, b, preferred_element_type=jnp.float32)

        def conv_band(A, r_ref, w_ref, b_ref):
            # out[(n,y_out), (x_out,c_out)] = sum_dy ((R_dy @ A) @ W_dy) + bias
            out = b_ref[...]
            for dy in range(kh):
                out = out + dot(dot(r_ref[dy], A), w_ref[dy])
            return out

        def batch_norm(A, p_ref, gb_ref):
            # P is the channel-group averaging matrix, already scaled by 1/count.
            P = p_ref[...]
            gb = gb_ref[...]
            mean_l = jnp.sum(dot(A, P), axis=0, keepdims=True)         # per-lane mean
            diff = A - mean_l
            var_l = jnp.sum(dot(diff * diff, P), axis=0, keepdims=True)  # biased var
            return diff * jax.lax.rsqrt(var_l + BN_EPS) * gb[0:1, :] + gb[1:2, :]

        x = x_ref[...]                                      # (N*H, W*Cin)

        # entry_conv + SELU
        y = _selu(conv_band(x, r1_ref, we_ref, be_ref))     # (N*H, W*Cout)

        # base block: BN -> SELU -> conv -> BN -> SELU -> conv
        h = _selu(batch_norm(y, p1_ref, bn1_ref))
        h = conv_band(h, r1_ref, w1_ref, b1_ref)
        h = _selu(batch_norm(h, p1_ref, bn2_ref))
        h = conv_band(h, r1_ref, w2_ref, b2_ref)

        # residual
        z = y + h

        # final conv (stride 2, padding 1) + SELU
        f = _selu(conv_band(z, rf_ref, wf_ref, bf_ref))     # (N*Hf, Wf*Cout)

        # final BatchNorm2d
        o_ref[...] = batch_norm(f, pf_ref, bnf_ref)

    return kernel


# ---------------------------------------------------------------------------
# Host-side (tiny) parameter / layout preparation — plain JAX on weights only
# ---------------------------------------------------------------------------
def _band_weights(w_oihw, W_in, W_out, stride, pad):
    """(Cout,Cin,kh,kw) torch conv weight -> (kh, W_in*Cin, W_out*Cout) banded mats."""
    Cout, Cin, kh, kw = w_oihw.shape
    w = jnp.transpose(w_oihw.astype(jnp.float32), (2, 3, 1, 0))   # (kh, kw, Cin, Cout)
    x_in = jnp.arange(W_in)
    x_out = jnp.arange(W_out)
    dx = x_in[:, None] - stride * x_out[None, :] + pad            # (W_in, W_out)
    valid = ((dx >= 0) & (dx < kw)).astype(jnp.float32)
    dx_c = jnp.clip(dx, 0, kw - 1)
    band = w[:, dx_c, :, :] * valid[None, :, :, None, None]       # (kh, W_in, W_out, Cin, Cout)
    band = jnp.transpose(band, (0, 1, 3, 2, 4))                   # (kh, W_in, Cin, W_out, Cout)
    return band.reshape(kh, W_in * Cin, W_out * Cout)


def _row_select(N, H_in, H_out, kh, stride, pad):
    """(kh, N*H_out, N*H_in) row-selection matrices: R_dy[(n,y_out),(n,y_in)]=1
    iff y_in == stride*y_out + dy - pad (inside the same image), else 0."""
    ri = jnp.arange(N * H_in)
    ro = jnp.arange(N * H_out)
    n_i, y_i = ri // H_in, ri % H_in
    n_o, y_o = ro // H_out, ro % H_out
    mats = []
    for dy in range(kh):
        want = stride * y_o + dy - pad
        m = ((n_i[None, :] == n_o[:, None])
             & (y_i[None, :] == want[:, None])
             & (want[:, None] >= 0) & (want[:, None] < H_in))
        mats.append(m.astype(jnp.float32))
    return jnp.stack(mats, axis=0)


def _chan_pool(W_spatial, C, count):
    """(L,L) matrix that sums lanes of the same channel group and divides by count."""
    L = W_spatial * C
    l = jnp.arange(L)
    return ((l[:, None] % C) == (l[None, :] % C)).astype(jnp.float32) / float(count)


def _lane(v, reps):
    """Per-channel vector (C,) -> lane-broadcast row (1, reps*C) with lane = x*C + c."""
    return jnp.tile(v.astype(jnp.float32), reps).reshape(1, -1)


# ---------------------------------------------------------------------------
# DownsamplingBlock2D forward (base_block='conv')
# ---------------------------------------------------------------------------
@jax.jit
def downsampling_block_2d(x_nchw, params):
    x_nchw = x_nchw.astype(jnp.float32)
    N, Cin, H, W = x_nchw.shape
    Cout, _, k, _ = params["entry_w"].shape
    pad = (k - 1) // 2
    Hf = (H + 2 * pad - k) // 2 + 1
    Wf = (W + 2 * pad - k) // 2 + 1
    M, Mf = N * H, N * Hf
    Lf = Wf * Cout

    # activation layout: rows = (n, y), lanes = (x, c)
    X = jnp.transpose(x_nchw, (0, 2, 3, 1)).reshape(M, W * Cin)

    R1 = _row_select(N, H, H, k, 1, pad)            # same convs
    RF = _row_select(N, H, Hf, k, 2, pad)           # stride-2 final conv

    we = _band_weights(params["entry_w"], W, W, 1, pad)
    w1 = _band_weights(params["bb_conv1_w"], W, W, 1, pad)
    w2 = _band_weights(params["bb_conv2_w"], W, W, 1, pad)
    wf = _band_weights(params["final_w"], W, Wf, 2, pad)

    be = _lane(params["entry_b"], W)
    b1 = _lane(params["bb_conv1_b"], W)
    b2 = _lane(params["bb_conv2_b"], W)
    bf = _lane(params["final_b"], Wf)

    bn1 = jnp.concatenate([_lane(params["bb_bn1_g"], W), _lane(params["bb_bn1_b"], W)], 0)
    bn2 = jnp.concatenate([_lane(params["bb_bn2_g"], W), _lane(params["bb_bn2_b"], W)], 0)
    bnf = jnp.concatenate([_lane(params["bn_g"], Wf), _lane(params["bn_b"], Wf)], 0)

    P1 = _chan_pool(W, Cout, N * H * W)             # BN stats over (N, H, W)
    Pf = _chan_pool(Wf, Cout, N * Hf * Wf)

    out2d = pl.pallas_call(
        _make_fused_kernel(k),
        out_shape=jax.ShapeDtypeStruct((Mf, Lf), jnp.float32),
    )(X, R1, RF, we, be, w1, b1, w2, b2, wf, bf, bn1, bn2, bnf, P1, Pf)

    out = out2d.reshape(N, Hf, Wf, Cout)
    return jnp.transpose(out, (0, 3, 1, 2))         # back to NCHW


# ---------------------------------------------------------------------------
# Pure-JAX reference (for correctness check)
# ---------------------------------------------------------------------------
def _ref_conv(x_nhwc, w_oihw, b, stride, pad):
    y = jax.lax.conv_general_dilated(
        x_nhwc, jnp.transpose(w_oihw, (2, 3, 1, 0)), (stride, stride),
        [(pad, pad), (pad, pad)], dimension_numbers=("NHWC", "HWIO", "NHWC"))
    return y + b


def _ref_bn(x_nhwc, g, b):
    m = jnp.mean(x_nhwc, axis=(0, 1, 2), keepdims=True)
    v = jnp.mean((x_nhwc - m) ** 2, axis=(0, 1, 2), keepdims=True)
    return (x_nhwc - m) * jax.lax.rsqrt(v + BN_EPS) * g + b


def reference_forward(x_nchw, p):
    x = jnp.transpose(x_nchw, (0, 2, 3, 1)).astype(jnp.float32)
    x = _selu(_ref_conv(x, p["entry_w"], p["entry_b"], 1, 1))
    h = _selu(_ref_bn(x, p["bb_bn1_g"], p["bb_bn1_b"]))
    h = _ref_conv(h, p["bb_conv1_w"], p["bb_conv1_b"], 1, 1)
    h = _selu(_ref_bn(h, p["bb_bn2_g"], p["bb_bn2_b"]))
    h = _ref_conv(h, p["bb_conv2_w"], p["bb_conv2_b"], 1, 1)
    x = x + h
    x = _selu(_ref_conv(x, p["final_w"], p["final_b"], 2, 1))
    x = _ref_bn(x, p["bn_g"], p["bn_b"])
    return jnp.transpose(x, (0, 3, 1, 2))


# ---------------------------------------------------------------------------
# Deterministic parameter init + main
# ---------------------------------------------------------------------------
def init_params(key, in_ch, out_ch, k):
    ks = jax.random.split(key, 14)
    def cw(kk, co, ci): return 0.1 * jax.random.normal(kk, (co, ci, k, k), jnp.float32)
    def cb(kk, co): return 0.1 * jax.random.normal(kk, (co,), jnp.float32)
    def bng(kk, c): return 1.0 + 0.05 * jax.random.normal(kk, (c,), jnp.float32)
    def bnb(kk, c): return 0.05 * jax.random.normal(kk, (c,), jnp.float32)
    return {
        "entry_w": cw(ks[0], out_ch, in_ch), "entry_b": cb(ks[1], out_ch),
        "bb_bn1_g": bng(ks[2], out_ch), "bb_bn1_b": bnb(ks[3], out_ch),
        "bb_conv1_w": cw(ks[4], out_ch, out_ch), "bb_conv1_b": cb(ks[5], out_ch),
        "bb_bn2_g": bng(ks[6], out_ch), "bb_bn2_b": bnb(ks[7], out_ch),
        "bb_conv2_w": cw(ks[8], out_ch, out_ch), "bb_conv2_b": cb(ks[9], out_ch),
        "final_w": cw(ks[10], out_ch, out_ch), "final_b": cb(ks[11], out_ch),
        "bn_g": bng(ks[12], out_ch), "bn_b": bnb(ks[13], out_ch),
    }


if __name__ == "__main__":
    key = jax.random.PRNGKey(0)
    k_x, k_p = jax.random.split(key)
    in_channels, out_channels, kernel_size = 4, 8, 3
    x = jax.random.normal(k_x, (2, in_channels, 16, 16), jnp.float32)  # NCHW

    params = init_params(k_p, in_channels, out_channels, kernel_size)

    out = jax.block_until_ready(downsampling_block_2d(x, params))
    assert out.shape == (2, out_channels, 8, 8), out.shape

    ref = jax.block_until_ready(reference_forward(x, params))
    assert jnp.allclose(out, ref, atol=1e-4, rtol=1e-4), float(jnp.max(jnp.abs(out - ref)))

    print("KERNEL_OK")
</pallas_src>

<mosaic_0001>
module attributes {stable_mosaic.version = 11 : i64} {
  func.func @kernel(%arg0: memref<32x64xf32, #tpu.memory_space<vmem>>, %arg1: memref<3x32x32xf32, #tpu.memory_space<vmem>>, %arg2: memref<3x16x32xf32, #tpu.memory_space<vmem>>, %arg3: memref<3x64x128xf32, #tpu.memory_space<vmem>>, %arg4: memref<1x128xf32, #tpu.memory_space<vmem>>, %arg5: memref<3x128x128xf32, #tpu.memory_space<vmem>>, %arg6: memref<1x128xf32, #tpu.memory_space<vmem>>, %arg7: memref<3x128x128xf32, #tpu.memory_space<vmem>>, %arg8: memref<1x128xf32, #tpu.memory_space<vmem>>, %arg9: memref<3x128x64xf32, #tpu.memory_space<vmem>>, %arg10: memref<1x64xf32, #tpu.memory_space<vmem>>, %arg11: memref<2x128xf32, #tpu.memory_space<vmem>>, %arg12: memref<2x128xf32, #tpu.memory_space<vmem>>, %arg13: memref<2x64xf32, #tpu.memory_space<vmem>>, %arg14: memref<128x128xf32, #tpu.memory_space<vmem>>, %arg15: memref<64x64xf32, #tpu.memory_space<vmem>>, %arg16: memref<16x64xf32, #tpu.memory_space<vmem>>) attributes {dimension_semantics = [], scalar_prefetch = 0 : i64, scratch_operands = 0 : i64, tpu.core_type = #tpu.core_type<tc>} {
    %c0 = arith.constant 0 : index
    %c0_0 = arith.constant 0 : index
    %0 = vector.load %arg0[%c0, %c0_0] : memref<32x64xf32, #tpu.memory_space<vmem>>, vector<32x64xf32>
    %c0_1 = arith.constant 0 : index
    %c0_2 = arith.constant 0 : index
    %1 = vector.load %arg4[%c0_1, %c0_2] : memref<1x128xf32, #tpu.memory_space<vmem>>, vector<1x128xf32>
    %c0_3 = arith.constant 0 : index
    %c0_4 = arith.constant 0 : index
    %c0_5 = arith.constant 0 : index
    %2 = vector.load %arg1[%c0_3, %c0_4, %c0_5] : memref<3x32x32xf32, #tpu.memory_space<vmem>>, vector<1x32x32xf32>
    %3 = vector.shape_cast %2 : vector<1x32x32xf32> to vector<32x32xf32>
    %cst = arith.constant dense<0.000000e+00> : vector<32x64xf32>
    %4 = tpu.matmul %3, %0, %cst {dimension_numbers = #tpu.dot_dimension_numbers<[1], [0], [0], [1], [0, 0, 1, 1], [], []>} : vector<32x32xf32>, vector<32x64xf32>, vector<32x64xf32> -> vector<32x64xf32>
    %c0_6 = arith.constant 0 : index
    %c0_7 = arith.constant 0 : index
    %c0_8 = arith.constant 0 : index
    %5 = vector.load %arg3[%c0_6, %c0_7, %c0_8] : memref<3x64x128xf32, #tpu.memory_space<vmem>>, vector<1x64x128xf32>
    %6 = vector.shape_cast %5 : vector<1x64x128xf32> to vector<64x128xf32>
    %cst_9 = arith.constant dense<0.000000e+00> : vector<32x128xf32>
    %7 = tpu.matmul %4, %6, %cst_9 {dimension_numbers = #tpu.dot_dimension_numbers<[1], [0], [0], [1], [0, 0, 1, 1], [], []>} : vector<32x64xf32>, vector<64x128xf32>, vector<32x128xf32> -> vector<32x128xf32>
    %8 = vector.broadcast %1 : vector<1x128xf32> to vector<32x128xf32>
    %9 = arith.addf %8, %7 : vector<32x128xf32>
    %c1 = arith.constant 1 : index
    %c0_10 = arith.constant 0 : index
    %c0_11 = arith.constant 0 : index
    %10 = vector.load %arg1[%c1, %c0_10, %c0_11] : memref<3x32x32xf32, #tpu.memory_space<vmem>>, vector<1x32x32xf32>
    %11 = vector.shape_cast %10 : vector<1x32x32xf32> to vector<32x32xf32>
    %cst_12 = arith.constant dense<0.000000e+00> : vector<32x64xf32>
    %12 = tpu.matmul %11, %0, %cst_12 {dimension_numbers = #tpu.dot_dimension_numbers<[1], [0], [0], [1], [0, 0, 1, 1], [], []>} : vector<32x32xf32>, vector<32x64xf32>, vector<32x64xf32> -> vector<32x64xf32>
    %c1_13 = arith.constant 1 : index
    %c0_14 = arith.constant 0 : index
    %c0_15 = arith.constant 0 : index
    %13 = vector.load %arg3[%c1_13, %c0_14, %c0_15] : memref<3x64x128xf32, #tpu.memory_space<vmem>>, vector<1x64x128xf32>
    %14 = vector.shape_cast %13 : vector<1x64x128xf32> to vector<64x128xf32>
    %cst_16 = arith.constant dense<0.000000e+00> : vector<32x128xf32>
    %15 = tpu.matmul %12, %14, %cst_16 {dimension_numbers = #tpu.dot_dimension_numbers<[1], [0], [0], [1], [0, 0, 1, 1], [], []>} : vector<32x64xf32>, vector<64x128xf32>, vector<32x128xf32> -> vector<32x128xf32>
    %16 = arith.addf %9, %15 : vector<32x128xf32>
    %c2 = arith.constant 2 : index
    %c0_17 = arith.constant 0 : index
    %c0_18 = arith.constant 0 : index
    %17 = vector.load %arg1[%c2, %c0_17, %c0_18] : memref<3x32x32xf32, #tpu.memory_space<vmem>>, vector<1x32x32xf32>
    %18 = vector.shape_cast %17 : vector<1x32x32xf32> to vector<32x32xf32>
    %cst_19 = arith.constant dense<0.000000e+00> : vector<32x64xf32>
    %19 = tpu.matmul %18, %0, %cst_19 {dimension_numbers = #tpu.dot_dimension_numbers<[1], [0], [0], [1], [0, 0, 1, 1], [], []>} : vector<32x32xf32>, vector<32x64xf32>, vector<32x64xf32> -> vector<32x64xf32>
    %c2_20 = arith.constant 2 : index
    %c0_21 = arith.constant 0 : index
    %c0_22 = arith.constant 0 : index
    %20 = vector.load %arg3[%c2_20, %c0_21, %c0_22] : memref<3x64x128xf32, #tpu.memory_space<vmem>>, vector<1x64x128xf32>
    %21 = vector.shape_cast %20 : vector<1x64x128xf32> to vector<64x128xf32>
    %cst_23 = arith.constant dense<0.000000e+00> : vector<32x128xf32>
    %22 = tpu.matmul %19, %21, %cst_23 {dimension_numbers = #tpu.dot_dimension_numbers<[1], [0], [0], [1], [0, 0, 1, 1], [], []>} : vector<32x64xf32>, vector<64x128xf32>, vector<32x128xf32> -> vector<32x128xf32>
    %23 = arith.addf %16, %22 : vector<32x128xf32>
    %cst_24 = arith.constant 0.000000e+00 : f32
    %24 = vector.broadcast %cst_24 : f32 to vector<32x128xf32>
    %25 = arith.cmpf ogt, %23, %24 : vector<32x128xf32>
    %26 = math.exp %23 : vector<32x128xf32>
    %cst_25 = arith.constant 1.000000e+00 : f32
    %27 = vector.broadcast %cst_25 : f32 to vector<32x128xf32>
    %28 = arith.subf %26, %27 : vector<32x128xf32>
    %cst_26 = arith.constant 1.67326319 : f32
    %29 = vector.broadcast %cst_26 : f32 to vector<32x128xf32>
    %30 = arith.mulf %29, %28 : vector<32x128xf32>
    %31 = arith.select %25, %23, %30 : vector<32x128xi1>, vector<32x128xf32>
    %cst_27 = arith.constant 1.05070102 : f32
    %32 = vector.broadcast %cst_27 : f32 to vector<32x128xf32>
    %33 = arith.mulf %32, %31 : vector<32x128xf32>
    %c0_28 = arith.constant 0 : index
    %c0_29 = arith.constant 0 : index
    %34 = vector.load %arg14[%c0_28, %c0_29] : memref<128x128xf32, #tpu.memory_space<vmem>>, vector<128x128xf32>
    %c0_30 = arith.constant 0 : index
    %c0_31 = arith.constant 0 : index
    %35 = vector.load %arg11[%c0_30, %c0_31] : memref<2x128xf32, #tpu.memory_space<vmem>>, vector<2x128xf32>
    %cst_32 = arith.constant dense<0.000000e+00> : vector<32x128xf32>
    %36 = tpu.matmul %33, %34, %cst_32 {dimension_numbers = #tpu.dot_dimension_numbers<[1], [0], [0], [1], [0, 0, 1, 1], [], []>} : vector<32x128xf32>, vector<128x128xf32>, vector<32x128xf32> -> vector<32x128xf32>
    %cst_33 = arith.constant dense<0.000000e+00> : vector<128xf32>
    %37 = vector.multi_reduction <add>, %36, %cst_33 [0] : vector<32x128xf32> to vector<128xf32>
    %38 = vector.shape_cast %37 : vector<128xf32> to vector<1x128xf32>
    %39 = vector.broadcast %38 : vector<1x128xf32> to vector<32x128xf32>
    %40 = arith.subf %33, %39 : vector<32x128xf32>
    %41 = arith.mulf %40, %40 : vector<32x128xf32>
    %cst_34 = arith.constant dense<0.000000e+00> : vector<32x128xf32>
    %42 = tpu.matmul %41, %34, %cst_34 {dimension_numbers = #tpu.dot_dimension_numbers<[1], [0], [0], [1], [0, 0, 1, 1], [], []>} : vector<32x128xf32>, vector<128x128xf32>, vector<32x128xf32> -> vector<32x128xf32>
    %cst_35 = arith.constant dense<0.000000e+00> : vector<128xf32>
    %43 = vector.multi_reduction <add>, %42, %cst_35 [0] : vector<32x128xf32> to vector<128xf32>
    %44 = vector.shape_cast %43 : vector<128xf32> to vector<1x128xf32>
    %cst_36 = arith.constant 9.99999974E-6 : f32
    %45 = vector.broadcast %cst_36 : f32 to vector<1x128xf32>
    %46 = arith.addf %44, %45 : vector<1x128xf32>
    %47 = math.rsqrt %46 : vector<1x128xf32>
    %48 = vector.broadcast %47 : vector<1x128xf32> to vector<32x128xf32>
    %49 = arith.mulf %40, %48 : vector<32x128xf32>
    %50 = vector.extract_strided_slice %35 {offsets = [0, 0], sizes = [1, 128], strides = [1, 1]} : vector<2x128xf32> to vector<1x128xf32>
    %51 = vector.broadcast %50 : vector<1x128xf32> to vector<32x128xf32>
    %52 = arith.mulf %49, %51 : vector<32x128xf32>
    %53 = vector.extract_strided_slice %35 {offsets = [1, 0], sizes = [1, 128], strides = [1, 1]} : vector<2x128xf32> to vector<1x128xf32>
    %54 = vector.broadcast %53 : vector<1x128xf32> to vector<32x128xf32>
    %55 = arith.addf %52, %54 : vector<32x128xf32>
    %cst_37 = arith.constant 0.000000e+00 : f32
    %56 = vector.broadcast %cst_37 : f32 to vector<32x128xf32>
    %57 = arith.cmpf ogt, %55, %56 : vector<32x128xf32>
    %58 = math.exp %55 : vector<32x128xf32>
    %cst_38 = arith.constant 1.000000e+00 : f32
    %59 = vector.broadcast %cst_38 : f32 to vector<32x128xf32>
    %60 = arith.subf %58, %59 : vector<32x128xf32>
    %cst_39 = arith.constant 1.67326319 : f32
    %61 = vector.broadcast %cst_39 : f32 to vector<32x128xf32>
    %62 = arith.mulf %61, %60 : vector<32x128xf32>
    %63 = arith.select %57, %55, %62 : vector<32x128xi1>, vector<32x128xf32>
    %cst_40 = arith.constant 1.05070102 : f32
    %64 = vector.broadcast %cst_40 : f32 to vector<32x128xf32>
    %65 = arith.mulf %64, %63 : vector<32x128xf32>
    %c0_41 = arith.constant 0 : index
    %c0_42 = arith.constant 0 : index
    %66 = vector.load %arg6[%c0_41, %c0_42] : memref<1x128xf32, #tpu.memory_space<vmem>>, vector<1x128xf32>
    %c0_43 = arith.constant 0 : index
    %c0_44 = arith.constant 0 : index
    %c0_45 = arith.constant 0 : index
    %67 = vector.load %arg1[%c0_43, %c0_44, %c0_45] : memref<3x32x32xf32, #tpu.memory_space<vmem>>, vector<1x32x32xf32>
    %68 = vector.shape_cast %67 : vector<1x32x32xf32> to vector<32x32xf32>
    %cst_46 = arith.constant dense<0.000000e+00> : vector<32x128xf32>
    %69 = tpu.matmul %68, %65, %cst_46 {dimension_numbers = #tpu.dot_dimension_numbers<[1], [0], [0], [1], [0, 0, 1, 1], [], []>} : vector<32x32xf32>, vector<32x128xf32>, vector<32x128xf32> -> vector<32x128xf32>
    %c0_47 = arith.constant 0 : index
    %c0_48 = arith.constant 0 : index
    %c0_49 = arith.constant 0 : index
    %70 = vector.load %arg5[%c0_47, %c0_48, %c0_49] : memref<3x128x128xf32, #tpu.memory_space<vmem>>, vector<1x128x128xf32>
    %71 = vector.shape_cast %70 : vector<1x128x128xf32> to vector<128x128xf32>
    %cst_50 = arith.constant dense<0.000000e+00> : vector<32x128xf32>
    %72 = tpu.matmul %69, %71, %cst_50 {dimension_numbers = #tpu.dot_dimension_numbers<[1], [0], [0], [1], [0, 0, 1, 1], [], []>} : vector<32x128xf32>, vector<128x128xf32>, vector<32x128xf32> -> vector<32x128xf32>
    %73 = vector.broadcast %66 : vector<1x128xf32> to vector<32x128xf32>
    %74 = arith.addf %73, %72 : vector<32x128xf32>
    %c1_51 = arith.constant 1 : index
    %c0_52 = arith.constant 0 : index
    %c0_53 = arith.constant 0 : index
    %75 = vector.load %arg1[%c1_51, %c0_52, %c0_53] : memref<3x32x32xf32, #tpu.memory_space<vmem>>, vector<1x32x32xf32>
    %76 = vector.shape_cast %75 : vector<1x32x32xf32> to vector<32x32xf32>
    %cst_54 = arith.constant dense<0.000000e+00> : vector<32x128xf32>
    %77 = tpu.matmul %76, %65, %cst_54 {dimension_numbers = #tpu.dot_dimension_numbers<[1], [0], [0], [1], [0, 0, 1, 1], [], []>} : vector<32x32xf32>, vector<32x128xf32>, vector<32x128xf32> -> vector<32x128xf32>
    %c1_55 = arith.constant 1 : index
    %c0_56 = arith.constant 0 : index
    %c0_57 = arith.constant 0 : index
    %78 = vector.load %arg5[%c1_55, %c0_56, %c0_57] : memref<3x128x128xf32, #tpu.memory_space<vmem>>, vector<1x128x128xf32>
    %79 = vector.shape_cast %78 : vector<1x128x128xf32> to vector<128x128xf32>
    %cst_58 = arith.constant dense<0.000000e+00> : vector<32x128xf32>
    %80 = tpu.matmul %77, %79, %cst_58 {dimension_numbers = #tpu.dot_dimension_numbers<[1], [0], [0], [1], [0, 0, 1, 1], [], []>} : vector<32x128xf32>, vector<128x128xf32>, vector<32x128xf32> -> vector<32x128xf32>
    %81 = arith.addf %74, %80 : vector<32x128xf32>
    %c2_59 = arith.constant 2 : index
    %c0_60 = arith.constant 0 : index
    %c0_61 = arith.constant 0 : index
    %82 = vector.load %arg1[%c2_59, %c0_60, %c0_61] : memref<3x32x32xf32, #tpu.memory_space<vmem>>, vector<1x32x32xf32>
    %83 = vector.shape_cast %82 : vector<1x32x32xf32> to vector<32x32xf32>
    %cst_62 = arith.constant dense<0.000000e+00> : vector<32x128xf32>
    %84 = tpu.matmul %83, %65, %cst_62 {dimension_numbers = #tpu.dot_dimension_numbers<[1], [0], [0], [1], [0, 0, 1, 1], [], []>} : vector<32x32xf32>, vector<32x128xf32>, vector<32x128xf32> -> vector<32x128xf32>
    %c2_63 = arith.constant 2 : index
    %c0_64 = arith.constant 0 : index
    %c0_65 = arith.constant 0 : index
    %85 = vector.load %arg5[%c2_63, %c0_64, %c0_65] : memref<3x128x128xf32, #tpu.memory_space<vmem>>, vector<1x128x128xf32>
    %86 = vector.shape_cast %85 : vector<1x128x128xf32> to vector<128x128xf32>
    %cst_66 = arith.constant dense<0.000000e+00> : vector<32x128xf32>
    %87 = tpu.matmul %84, %86, %cst_66 {dimension_numbers = #tpu.dot_dimension_numbers<[1], [0], [0], [1], [0, 0, 1, 1], [], []>} : vector<32x128xf32>, vector<128x128xf32>, vector<32x128xf32> -> vector<32x128xf32>
    %88 = arith.addf %81, %87 : vector<32x128xf32>
    %c0_67 = arith.constant 0 : index
    %c0_68 = arith.constant 0 : index
    %89 = vector.load %arg14[%c0_67, %c0_68] : memref<128x128xf32, #tpu.memory_space<vmem>>, vector<128x128xf32>
    %c0_69 = arith.constant 0 : index
    %c0_70 = arith.constant 0 : index
    %90 = vector.load %arg12[%c0_69, %c0_70] : memref<2x128xf32, #tpu.memory_space<vmem>>, vector<2x128xf32>
    %cst_71 = arith.constant dense<0.000000e+00> : vector<32x128xf32>
    %91 = tpu.matmul %88, %89, %cst_71 {dimension_numbers = #tpu.dot_dimension_numbers<[1], [0], [0], [1], [0, 0, 1, 1], [], []>} : vector<32x128xf32>, vector<128x128xf32>, vector<32x128xf32> -> vector<32x128xf32>
    %cst_72 = arith.constant dense<0.000000e+00> : vector<128xf32>
    %92 = vector.multi_reduction <add>, %91, %cst_72 [0] : vector<32x128xf32> to vector<128xf32>
    %93 = vector.shape_cast %92 : vector<128xf32> to vector<1x128xf32>
    %94 = vector.broadcast %93 : vector<1x128xf32> to vector<32x128xf32>
    %95 = arith.subf %88, %94 : vector<32x128xf32>
    %96 = arith.mulf %95, %95 : vector<32x128xf32>
    %cst_73 = arith.constant dense<0.000000e+00> : vector<32x128xf32>
    %97 = tpu.matmul %96, %89, %cst_73 {dimension_numbers = #tpu.dot_dimension_numbers<[1], [0], [0], [1], [0, 0, 1, 1], [], []>} : vector<32x128xf32>, vector<128x128xf32>, vector<32x128xf32> -> vector<32x128xf32>
    %cst_74 = arith.constant dense<0.000000e+00> : vector<128xf32>
    %98 = vector.multi_reduction <add>, %97, %cst_74 [0] : vector<32x128xf32> to vector<128xf32>
    %99 = vector.shape_cast %98 : vector<128xf32> to vector<1x128xf32>
    %cst_75 = arith.constant 9.99999974E-6 : f32
    %100 = vector.broadcast %cst_75 : f32 to vector<1x128xf32>
    %101 = arith.addf %99, %100 : vector<1x128xf32>
    %102 = math.rsqrt %101 : vector<1x128xf32>
    %103 = vector.broadcast %102 : vector<1x128xf32> to vector<32x128xf32>
    %104 = arith.mulf %95, %103 : vector<32x128xf32>
    %105 = vector.extract_strided_slice %90 {offsets = [0, 0], sizes = [1, 128], strides = [1, 1]} : vector<2x128xf32> to vector<1x128xf32>
    %106 = vector.broadcast %105 : vector<1x128xf32> to vector<32x128xf32>
    %107 = arith.mulf %104, %106 : vector<32x128xf32>
    %108 = vector.extract_strided_slice %90 {offsets = [1, 0], sizes = [1, 128], strides = [1, 1]} : vector<2x128xf32> to vector<1x128xf32>
    %109 = vector.broadcast %108 : vector<1x128xf32> to vector<32x128xf32>
    %110 = arith.addf %107, %109 : vector<32x128xf32>
    %cst_76 = arith.constant 0.000000e+00 : f32
    %111 = vector.broadcast %cst_76 : f32 to vector<32x128xf32>
    %112 = arith.cmpf ogt, %110, %111 : vector<32x128xf32>
    %113 = math.exp %110 : vector<32x128xf32>
    %cst_77 = arith.constant 1.000000e+00 : f32
    %114 = vector.broadcast %cst_77 : f32 to vector<32x128xf32>
    %115 = arith.subf %113, %114 : vector<32x128xf32>
    %cst_78 = arith.constant 1.67326319 : f32
    %116 = vector.broadcast %cst_78 : f32 to vector<32x128xf32>
    %117 = arith.mulf %116, %115 : vector<32x128xf32>
    %118 = arith.select %112, %110, %117 : vector<32x128xi1>, vector<32x128xf32>
    %cst_79 = arith.constant 1.05070102 : f32
    %119 = vector.broadcast %cst_79 : f32 to vector<32x128xf32>
    %120 = arith.mulf %119, %118 : vector<32x128xf32>
    %c0_80 = arith.constant 0 : index
    %c0_81 = arith.constant 0 : index
    %121 = vector.load %arg8[%c0_80, %c0_81] : memref<1x128xf32, #tpu.memory_space<vmem>>, vector<1x128xf32>
    %c0_82 = arith.constant 0 : index
    %c0_83 = arith.constant 0 : index
    %c0_84 = arith.constant 0 : index
    %122 = vector.load %arg1[%c0_82, %c0_83, %c0_84] : memref<3x32x32xf32, #tpu.memory_space<vmem>>, vector<1x32x32xf32>
    %123 = vector.shape_cast %122 : vector<1x32x32xf32> to vector<32x32xf32>
    %cst_85 = arith.constant dense<0.000000e+00> : vector<32x128xf32>
    %124 = tpu.matmul %123, %120, %cst_85 {dimension_numbers = #tpu.dot_dimension_numbers<[1], [0], [0], [1], [0, 0, 1, 1], [], []>} : vector<32x32xf32>, vector<32x128xf32>, vector<32x128xf32> -> vector<32x128xf32>
    %c0_86 = arith.constant 0 : index
    %c0_87 = arith.constant 0 : index
    %c0_88 = arith.constant 0 : index
    %125 = vector.load %arg7[%c0_86, %c0_87, %c0_88] : memref<3x128x128xf32, #tpu.memory_space<vmem>>, vector<1x128x128xf32>
    %126 = vector.shape_cast %125 : vector<1x128x128xf32> to vector<128x128xf32>
    %cst_89 = arith.constant dense<0.000000e+00> : vector<32x128xf32>
    %127 = tpu.matmul %124, %126, %cst_89 {dimension_numbers = #tpu.dot_dimension_numbers<[1], [0], [0], [1], [0, 0, 1, 1], [], []>} : vector<32x128xf32>, vector<128x128xf32>, vector<32x128xf32> -> vector<32x128xf32>
    %128 = vector.broadcast %121 : vector<1x128xf32> to vector<32x128xf32>
    %129 = arith.addf %128, %127 : vector<32x128xf32>
    %c1_90 = arith.constant 1 : index
    %c0_91 = arith.constant 0 : index
    %c0_92 = arith.constant 0 : index
    %130 = vector.load %arg1[%c1_90, %c0_91, %c0_92] : memref<3x32x32xf32, #tpu.memory_space<vmem>>, vector<1x32x32xf32>
    %131 = vector.shape_cast %130 : vector<1x32x32xf32> to vector<32x32xf32>
    %cst_93 = arith.constant dense<0.000000e+00> : vector<32x128xf32>
    %132 = tpu.matmul %131, %120, %cst_93 {dimension_numbers = #tpu.dot_dimension_numbers<[1], [0], [0], [1], [0, 0, 1, 1], [], []>} : vector<32x32xf32>, vector<32x128xf32>, vector<32x128xf32> -> vector<32x128xf32>
    %c1_94 = arith.constant 1 : index
    %c0_95 = arith.constant 0 : index
    %c0_96 = arith.constant 0 : index
    %133 = vector.load %arg7[%c1_94, %c0_95, %c0_96] : memref<3x128x128xf32, #tpu.memory_space<vmem>>, vector<1x128x128xf32>
    %134 = vector.shape_cast %133 : vector<1x128x128xf32> to vector<128x128xf32>
    %cst_97 = arith.constant dense<0.000000e+00> : vector<32x128xf32>
    %135 = tpu.matmul %132, %134, %cst_97 {dimension_numbers = #tpu.dot_dimension_numbers<[1], [0], [0], [1], [0, 0, 1, 1], [], []>} : vector<32x128xf32>, vector<128x128xf32>, vector<32x128xf32> -> vector<32x128xf32>
    %136 = arith.addf %129, %135 : vector<32x128xf32>
    %c2_98 = arith.constant 2 : index
    %c0_99 = arith.constant 0 : index
    %c0_100 = arith.constant 0 : index
    %137 = vector.load %arg1[%c2_98, %c0_99, %c0_100] : memref<3x32x32xf32, #tpu.memory_space<vmem>>, vector<1x32x32xf32>
    %138 = vector.shape_cast %137 : vector<1x32x32xf32> to vector<32x32xf32>
    %cst_101 = arith.constant dense<0.000000e+00> : vector<32x128xf32>
    %139 = tpu.matmul %138, %120, %cst_101 {dimension_numbers = #tpu.dot_dimension_numbers<[1], [0], [0], [1], [0, 0, 1, 1], [], []>} : vector<32x32xf32>, vector<32x128xf32>, vector<32x128xf32> -> vector<32x128xf32>
    %c2_102 = arith.constant 2 : index
    %c0_103 = arith.constant 0 : index
    %c0_104 = arith.constant 0 : index
    %140 = vector.load %arg7[%c2_102, %c0_103, %c0_104] : memref<3x128x128xf32, #tpu.memory_space<vmem>>, vector<1x128x128xf32>
    %141 = vector.shape_cast %140 : vector<1x128x128xf32> to vector<128x128xf32>
    %cst_105 = arith.constant dense<0.000000e+00> : vector<32x128xf32>
    %142 = tpu.matmul %139, %141, %cst_105 {dimension_numbers = #tpu.dot_dimension_numbers<[1], [0], [0], [1], [0, 0, 1, 1], [], []>} : vector<32x128xf32>, vector<128x128xf32>, vector<32x128xf32> -> vector<32x128xf32>
    %143 = arith.addf %136, %142 : vector<32x128xf32>
    %144 = arith.addf %33, %143 : vector<32x128xf32>
    %c0_106 = arith.constant 0 : index
    %c0_107 = arith.constant 0 : index
    %145 = vector.load %arg10[%c0_106, %c0_107] : memref<1x64xf32, #tpu.memory_space<vmem>>, vector<1x64xf32>
    %c0_108 = arith.constant 0 : index
    %c0_109 = arith.constant 0 : index
    %c0_110 = arith.constant 0 : index
    %146 = vector.load %arg2[%c0_108, %c0_109, %c0_110] : memref<3x16x32xf32, #tpu.memory_space<vmem>>, vector<1x16x32xf32>
    %147 = vector.shape_cast %146 : vector<1x16x32xf32> to vector<16x32xf32>
    %cst_111 = arith.constant dense<0.000000e+00> : vector<16x128xf32>
    %148 = tpu.matmul %147, %144, %cst_111 {dimension_numbers = #tpu.dot_dimension_numbers<[1], [0], [0], [1], [0, 0, 1, 1], [], []>} : vector<16x32xf32>, vector<32x128xf32>, vector<16x128xf32> -> vector<16x128xf32>
    %c0_112 = arith.constant 0 : index
    %c0_113 = arith.constant 0 : index
    %c0_114 = arith.constant 0 : index
    %149 = vector.load %arg9[%c0_112, %c0_113, %c0_114] : memref<3x128x64xf32, #tpu.memory_space<vmem>>, vector<1x128x64xf32>
    %150 = vector.shape_cast %149 : vector<1x128x64xf32> to vector<128x64xf32>
    %cst_115 = arith.constant dense<0.000000e+00> : vector<16x64xf32>
    %151 = tpu.matmul %148, %150, %cst_115 {dimension_numbers = #tpu.dot_dimension_numbers<[1], [0], [0], [1], [0, 0, 1, 1], [], []>} : vector<16x128xf32>, vector<128x64xf32>, vector<16x64xf32> -> vector<16x64xf32>
    %152 = vector.broadcast %145 : vector<1x64xf32> to vector<16x64xf32>
    %153 = arith.addf %152, %151 : vector<16x64xf32>
    %c1_116 = arith.constant 1 : index
    %c0_117 = arith.constant 0 : index
    %c0_118 = arith.constant 0 : index
    %154 = vector.load %arg2[%c1_116, %c0_117, %c0_118] : memref<3x16x32xf32, #tpu.memory_space<vmem>>, vector<1x16x32xf32>
    %155 = vector.shape_cast %154 : vector<1x16x32xf32> to vector<16x32xf32>
    %cst_119 = arith.constant dense<0.000000e+00> : vector<16x128xf32>
    %156 = tpu.matmul %155, %144, %cst_119 {dimension_numbers = #tpu.dot_dimension_numbers<[1], [0], [0], [1], [0, 0, 1, 1], [], []>} : vector<16x32xf32>, vector<32x128xf32>, vector<16x128xf32> -> vector<16x128xf32>
    %c1_120 = arith.constant 1 : index
    %c0_121 = arith.constant 0 : index
    %c0_122 = arith.constant 0 : index
    %157 = vector.load %arg9[%c1_120, %c0_121, %c0_122] : memref<3x128x64xf32, #tpu.memory_space<vmem>>, vector<1x128x64xf32>
    %158 = vector.shape_cast %157 : vector<1x128x64xf32> to vector<128x64xf32>
    %cst_123 = arith.constant dense<0.000000e+00> : vector<16x64xf32>
    %159 = tpu.matmul %156, %158, %cst_123 {dimension_numbers = #tpu.dot_dimension_numbers<[1], [0], [0], [1], [0, 0, 1, 1], [], []>} : vector<16x128xf32>, vector<128x64xf32>, vector<16x64xf32> -> vector<16x64xf32>
    %160 = arith.addf %153, %159 : vector<16x64xf32>
    %c2_124 = arith.constant 2 : index
    %c0_125 = arith.constant 0 : index
    %c0_126 = arith.constant 0 : index
    %161 = vector.load %arg2[%c2_124, %c0_125, %c0_126] : memref<3x16x32xf32, #tpu.memory_space<vmem>>, vector<1x16x32xf32>
    %162 = vector.shape_cast %161 : vector<1x16x32xf32> to vector<16x32xf32>
    %cst_127 = arith.constant dense<0.000000e+00> : vector<16x128xf32>
    %163 = tpu.matmul %162, %144, %cst_127 {dimension_numbers = #tpu.dot_dimension_numbers<[1], [0], [0], [1], [0, 0, 1, 1], [], []>} : vector<16x32xf32>, vector<32x128xf32>, vector<16x128xf32> -> vector<16x128xf32>
    %c2_128 = arith.constant 2 : index
    %c0_129 = arith.constant 0 : index
    %c0_130 = arith.constant 0 : index
    %164 = vector.load %arg9[%c2_128, %c0_129, %c0_130] : memref<3x128x64xf32, #tpu.memory_space<vmem>>, vector<1x128x64xf32>
    %165 = vector.shape_cast %164 : vector<1x128x64xf32> to vector<128x64xf32>
    %cst_131 = arith.constant dense<0.000000e+00> : vector<16x64xf32>
    %166 = tpu.matmul %163, %165, %cst_131 {dimension_numbers = #tpu.dot_dimension_numbers<[1], [0], [0], [1], [0, 0, 1, 1], [], []>} : vector<16x128xf32>, vector<128x64xf32>, vector<16x64xf32> -> vector<16x64xf32>
    %167 = arith.addf %160, %166 : vector<16x64xf32>
    %cst_132 = arith.constant 0.000000e+00 : f32
    %168 = vector.broadcast %cst_132 : f32 to vector<16x64xf32>
    %169 = arith.cmpf ogt, %167, %168 : vector<16x64xf32>
    %170 = math.exp %167 : vector<16x64xf32>
    %cst_133 = arith.constant 1.000000e+00 : f32
    %171 = vector.broadcast %cst_133 : f32 to vector<16x64xf32>
    %172 = arith.subf %170, %171 : vector<16x64xf32>
    %cst_134 = arith.constant 1.67326319 : f32
    %173 = vector.broadcast %cst_134 : f32 to vector<16x64xf32>
    %174 = arith.mulf %173, %172 : vector<16x64xf32>
    %175 = arith.select %169, %167, %174 : vector<16x64xi1>, vector<16x64xf32>
    %cst_135 = arith.constant 1.05070102 : f32
    %176 = vector.broadcast %cst_135 : f32 to vector<16x64xf32>
    %177 = arith.mulf %176, %175 : vector<16x64xf32>
    %c0_136 = arith.constant 0 : index
    %c0_137 = arith.constant 0 : index
    %178 = vector.load %arg15[%c0_136, %c0_137] : memref<64x64xf32, #tpu.memory_space<vmem>>, vector<64x64xf32>
    %c0_138 = arith.constant 0 : index
    %c0_139 = arith.constant 0 : index
    %179 = vector.load %arg13[%c0_138, %c0_139] : memref<2x64xf32, #tpu.memory_space<vmem>>, vector<2x64xf32>
    %cst_140 = arith.constant dense<0.000000e+00> : vector<16x64xf32>
    %180 = tpu.matmul %177, %178, %cst_140 {dimension_numbers = #tpu.dot_dimension_numbers<[1], [0], [0], [1], [0, 0, 1, 1], [], []>} : vector<16x64xf32>, vector<64x64xf32>, vector<16x64xf32> -> vector<16x64xf32>
    %cst_141 = arith.constant dense<0.000000e+00> : vector<64xf32>
    %181 = vector.multi_reduction <add>, %180, %cst_141 [0] : vector<16x64xf32> to vector<64xf32>
    %182 = vector.shape_cast %181 : vector<64xf32> to vector<1x64xf32>
    %183 = vector.broadcast %182 : vector<1x64xf32> to vector<16x64xf32>
    %184 = arith.subf %177, %183 : vector<16x64xf32>
    %185 = arith.mulf %184, %184 : vector<16x64xf32>
    %cst_142 = arith.constant dense<0.000000e+00> : vector<16x64xf32>
    %186 = tpu.matmul %185, %178, %cst_142 {dimension_numbers = #tpu.dot_dimension_numbers<[1], [0], [0], [1], [0, 0, 1, 1], [], []>} : vector<16x64xf32>, vector<64x64xf32>, vector<16x64xf32> -> vector<16x64xf32>
    %cst_143 = arith.constant dense<0.000000e+00> : vector<64xf32>
    %187 = vector.multi_reduction <add>, %186, %cst_143 [0] : vector<16x64xf32> to vector<64xf32>
    %188 = vector.shape_cast %187 : vector<64xf32> to vector<1x64xf32>
    %cst_144 = arith.constant 9.99999974E-6 : f32
    %189 = vector.broadcast %cst_144 : f32 to vector<1x64xf32>
    %190 = arith.addf %188, %189 : vector<1x64xf32>
    %191 = math.rsqrt %190 : vector<1x64xf32>
    %192 = vector.broadcast %191 : vector<1x64xf32> to vector<16x64xf32>
    %193 = arith.mulf %184, %192 : vector<16x64xf32>
    %194 = vector.extract_strided_slice %179 {offsets = [0, 0], sizes = [1, 64], strides = [1, 1]} : vector<2x64xf32> to vector<1x64xf32>
    %195 = vector.broadcast %194 : vector<1x64xf32> to vector<16x64xf32>
    %196 = arith.mulf %193, %195 : vector<16x64xf32>
    %197 = vector.extract_strided_slice %179 {offsets = [1, 0], sizes = [1, 64], strides = [1, 1]} : vector<2x64xf32> to vector<1x64xf32>
    %198 = vector.broadcast %197 : vector<1x64xf32> to vector<16x64xf32>
    %199 = arith.addf %196, %198 : vector<16x64xf32>
    %c0_145 = arith.constant 0 : index
    %c0_146 = arith.constant 0 : index
    %200 = vector.load %arg16[%c0_145, %c0_146] : memref<16x64xf32, #tpu.memory_space<vmem>>, vector<16x64xf32>
    tpu.vector_store %arg16[%c0_145, %c0_146], %199 {strides = array<i32>} : memref<16x64xf32, #tpu.memory_space<vmem>>, vector<16x64xf32>,
    return
  }
}

</mosaic_0001>

<llo_original>
// kernel: tile.73
$region0: #{tile.73}
  #allocation0 [shape = 's32[1]{0}', space=sflag, size = 0x4, scoped, tag = 'scoped memory for tile.73']
  %s0 = inlined_call_operand.vmem [shape: f32[8], index: 0, kind: input, shape index: {}]
  %s1 = inlined_call_operand.vmem [shape: f32[16,8], index: 1, kind: output, shape index: {}]
  // Predicated region
  $region2: #{tile.73} parent=0 // pred_check
    _
  $region3: #{tile.73} parent=0 // pred_check_branch
    %3 = sbr.rel (0) target = $region5
  $region4: #{tile.73} parent=0 // pred_region
    _
  $region5: #{tile.73} parent=0 // pred_fallthru
    _
  %v4 = vld [vmem:[%s0] ss:$0 sm:$0xff]
  %5 = vst [vmem:[%s1] sm:$0xff] %v4
  %s6 = scalar_lea.vmem %s1, 8
  %7 = vst [vmem:[%s6] sm:$0xff] %v4

// kernel: tile.74
$region0: #{tile.74}
  %s0 = inlined_call_operand.vmem [shape: f32[16,8], index: 0, kind: input, shape index: {}]
  %s1 = inlined_call_operand.vmem [shape: f32[1,128], index: 1, kind: output, shape index: {}]
  $region1: #{tile.74} parent=0
    #allocation0 [shape = 'u8[4096]{0}', space=vmem, size = 0x1000, scoped, tag = 'scoped mem for output reshape']
    %v2 = vld [vmem:[%s0] sm:$0x1]
    %vm3 = vcmask 64512
    %4 = vst.msk [vmem:[#allocation0] sm:$0x1] %vm3, %v2
    %s5 = scalar_lea.vmem %s0, 15
    %v6 = vld [vmem:[%s5] sm:$0x1]
    %7 = vrot.lane.b32.xlu0 %v6, 120
    %v8 = vpop.permute.xlu0 %7
    %vm9 = vcmask 1048512
    %10 = vst.msk [vmem:[#allocation0] sm:$0x1] %vm9, %v8
    %s11 = scalar_lea.vmem %s0, 14
    %v12 = vld [vmem:[%s11] sm:$0x1]
    %13 = vrot.lane.b32.xlu0 %v12, 112
    %v14 = vpop.permute.xlu0 %13
    %vm15 = vcmask 982912
    %16 = vst.msk [vmem:[#allocation0] sm:$0x1] %vm15, %v14
    %s17 = scalar_lea.vmem %s0, 13
    %v18 = vld [vmem:[%s17] sm:$0x1]
    %19 = vrot.lane.b32.xlu0 %v18, 104
    %v20 = vpop.permute.xlu0 %19
    %vm21 = vcmask 917312
    %22 = vst.msk [vmem:[#allocation0] sm:$0x1] %vm21, %v20
    %s23 = scalar_lea.vmem %s0, 12
    %v24 = vld [vmem:[%s23] sm:$0x1]
    %25 = vrot.lane.b32.xlu0 %v24, 96
    %v26 = vpop.permute.xlu0 %25
    %vm27 = vcmask 851712
    %28 = vst.msk [vmem:[#allocation0] sm:$0x1] %vm27, %v26
    %s29 = scalar_lea.vmem %s0, 11
    %v30 = vld [vmem:[%s29] sm:$0x1]
    %31 = vrot.lane.b32.xlu0 %v30, 88
    %v32 = vpop.permute.xlu0 %31
    %vm33 = vcmask 786112
    %34 = vst.msk [vmem:[#allocation0] sm:$0x1] %vm33, %v32
    %s35 = scalar_lea.vmem %s0, 10
    %v36 = vld [vmem:[%s35] sm:$0x1]
    %37 = vrot.lane.b32.xlu0 %v36, 80
    %v38 = vpop.permute.xlu0 %37
    %vm39 = vcmask 720512
    %40 = vst.msk [vmem:[#allocation0] sm:$0x1] %vm39, %v38
    %s41 = scalar_lea.vmem %s0, 9
    %v42 = vld [vmem:[%s41] sm:$0x1]
    %43 = vrot.lane.b32.xlu0 %v42, 72
    %v44 = vpop.permute.xlu0 %43
    %vm45 = vcmask 654912
    %46 = vst.msk [vmem:[#allocation0] sm:$0x1] %vm45, %v44
    %s47 = scalar_lea.vmem %s0, 8
    %v48 = vld [vmem:[%s47] sm:$0x1]
    %49 = vrot.lane.b32.xlu0 %v48, 64
    %v50 = vpop.permute.xlu0 %49
    %vm51 = vcmask 589312
    %52 = vst.msk [vmem:[#allocation0] sm:$0x1] %vm51, %v50
    %s53 = scalar_lea.vmem %s0, 7
    %v54 = vld [vmem:[%s53] sm:$0x1]
    %55 = vrot.lane.b32.xlu0 %v54, 56
    %v56 = vpop.permute.xlu0 %55
    %vm57 = vcmask 523712
    %58 = vst.msk [vmem:[#allocation0] sm:$0x1] %vm57, %v56
    %s59 = scalar_lea.vmem %s0, 6
    %v60 = vld [vmem:[%s59] sm:$0x1]
    %61 = vrot.lane.b32.xlu0 %v60, 48
    %v62 = vpop.permute.xlu0 %61
    %vm63 = vcmask 458112
    %64 = vst.msk [vmem:[#allocation0] sm:$0x1] %vm63, %v62
    %s65 = scalar_lea.vmem %s0, 5
    %v66 = vld [vmem:[%s65] sm:$0x1]
    %67 = vrot.lane.b32.xlu0 %v66, 40
    %v68 = vpop.permute.xlu0 %67
    %vm69 = vcmask 392512
    %70 = vst.msk [vmem:[#allocation0] sm:$0x1] %vm69, %v68
    %s71 = scalar_lea.vmem %s0, 4
    %v72 = vld [vmem:[%s71] sm:$0x1]
    %73 = vrot.lane.b32.xlu0 %v72, 32
    %v74 = vpop.permute.xlu0 %73
    %vm75 = vcmask 326912
    %76 = vst.msk [vmem:[#allocation0] sm:$0x1] %vm75, %v74
    %s77 = scalar_lea.vmem %s0, 3
    %v78 = vld [vmem:[%s77] sm:$0x1]
    %79 = vrot.lane.b32.xlu0 %v78, 24
    %v80 = vpop.permute.xlu0 %79
    %vm81 = vcmask 261312
    %82 = vst.msk [vmem:[#allocation0] sm:$0x1] %vm81, %v80
    %s83 = scalar_lea.vmem %s0, 2
    %v84 = vld [vmem:[%s83] sm:$0x1]
    %85 = vrot.lane.b32.xlu0 %v84, 16
    %v86 = vpop.permute.xlu0 %85
    %vm87 = vcmask 195712
    %88 = vst.msk [vmem:[#allocation0] sm:$0x1] %vm87, %v86
    %s89 = scalar_lea.vmem %s0, 1
    %v90 = vld [vmem:[%s89] sm:$0x1]
    %91 = vrot.lane.b32.xlu0 %v90, 8
    %v92 = vpop.permute.xlu0 %91
    %vm93 = vcmask 130112
    %94 = vst.msk [vmem:[#allocation0] sm:$0x1] %vm93, %v92
    %s96 = ssub.s32 2, 1
    %v97 = vld [vmem:[#allocation0] sm:%s96]
    %s99 = ssub.s32 2, 1
    %100 = vst [vmem:[%s1] sm:%s99] %v97

// kernel: tile.93
$region0: #{tile.93}
  #allocation0 [shape = 's32[1]{0}', space=sflag, size = 0x4, scoped, tag = 'scoped memory for tile.93']
  %s0 = inlined_call_operand.vmem [shape: f32[8], index: 0, kind: input, shape index: {}]
  %s1 = inlined_call_operand.vmem [shape: f32[8,8], index: 1, kind: output, shape index: {}]
  // Predicated region
  $region2: #{tile.93} parent=0 // pred_check
    _
  $region3: #{tile.93} parent=0 // pred_check_branch
    %3 = sbr.rel (0) target = $region5
  $region4: #{tile.93} parent=0 // pred_region
    _
  $region5: #{tile.93} parent=0 // pred_fallthru
    _
  %v4 = vld [vmem:[%s0] ss:$0 sm:$0xff]
  %5 = vst [vmem:[%s1] sm:$0xff] %v4

// kernel: tile.94
$region0: #{tile.94}
  %s0 = inlined_call_operand.vmem [shape: f32[8,8], index: 0, kind: input, shape index: {}]
  %s1 = inlined_call_operand.vmem [shape: f32[1,64], index: 1, kind: output, shape index: {}]
  $region1: #{tile.94} parent=0
    #allocation0 [shape = 'u8[4096]{0}', space=vmem, size = 0x1000, scoped, tag = 'scoped mem for output reshape']
    %v2 = vld [vmem:[%s0] sm:$0x1]
    %vm3 = vcmask 64512
    %4 = vst.msk [vmem:[#allocation0] sm:$0x1] %vm3, %v2
    %s5 = scalar_lea.vmem %s0, 7
    %v6 = vld [vmem:[%s5] sm:$0x1]
    %7 = vrot.lane.b32.xlu0 %v6, 56
    %v8 = vpop.permute.xlu0 %7
    %vm9 = vcmask 523712
    %10 = vst.msk [vmem:[#allocation0] sm:$0x1] %vm9, %v8
    %s11 = scalar_lea.vmem %s0, 6
    %v12 = vld [vmem:[%s11] sm:$0x1]
    %13 = vrot.lane.b32.xlu0 %v12, 48
    %v14 = vpop.permute.xlu0 %13
    %vm15 = vcmask 458112
    %16 = vst.msk [vmem:[#allocation0] sm:$0x1] %vm15, %v14
    %s17 = scalar_lea.vmem %s0, 5
    %v18 = vld [vmem:[%s17] sm:$0x1]
    %19 = vrot.lane.b32.xlu0 %v18, 40
    %v20 = vpop.permute.xlu0 %19
    %vm21 = vcmask 392512
    %22 = vst.msk [vmem:[#allocation0] sm:$0x1] %vm21, %v20
    %s23 = scalar_lea.vmem %s0, 4
    %v24 = vld [vmem:[%s23] sm:$0x1]
    %25 = vrot.lane.b32.xlu0 %v24, 32
    %v26 = vpop.permute.xlu0 %25
    %vm27 = vcmask 326912
    %28 = vst.msk [vmem:[#allocation0] sm:$0x1] %vm27, %v26
    %s29 = scalar_lea.vmem %s0, 3
    %v30 = vld [vmem:[%s29] sm:$0x1]
    %31 = vrot.lane.b32.xlu0 %v30, 24
    %v32 = vpop.permute.xlu0 %31
    %vm33 = vcmask 261312
    %34 = vst.msk [vmem:[#allocation0] sm:$0x1] %vm33, %v32
    %s35 = scalar_lea.vmem %s0, 2
    %v36 = vld [vmem:[%s35] sm:$0x1]
    %37 = vrot.lane.b32.xlu0 %v36, 16
    %v38 = vpop.permute.xlu0 %37
    %vm39 = vcmask 195712
    %40 = vst.msk [vmem:[#allocation0] sm:$0x1] %vm39, %v38
    %s41 = scalar_lea.vmem %s0, 1
    %v42 = vld [vmem:[%s41] sm:$0x1]
    %43 = vrot.lane.b32.xlu0 %v42, 8
    %v44 = vpop.permute.xlu0 %43
    %vm45 = vcmask 130112
    %46 = vst.msk [vmem:[#allocation0] sm:$0x1] %vm45, %v44
    %s48 = ssub.s32 2, 1
    %v49 = vld [vmem:[#allocation0] sm:%s48]
    %s51 = ssub.s32 2, 1
    %52 = vst [vmem:[%s1] sm:%s51] %v49

// kernel: downsampling_block_2d.1
$region0: #{downsampling_block_2d.1}
  #allocation0 [shape = 'u32[]', space=smem, size = 0x4, offset = 0x4, fixed_abs, tag = 'smem constant byte address 0x4 - core index']
  #allocation1 [shape = 'u32[72,128]{1,0:T(1,128)}', space=vmem, size = 0x9000, scoped, tag = 'internal scratch']
  %s0 = inlined_call_operand.vmem [shape: f32[32,64], index: 0, kind: input, shape index: {}]
  %s1 = inlined_call_operand.vmem [shape: f32[3,32,32], index: 1, kind: input, shape index: {}]
  %s2 = inlined_call_operand.vmem [shape: f32[3,16,32], index: 2, kind: input, shape index: {}]
  %s3 = inlined_call_operand.vmem [shape: f32[3,64,128], index: 3, kind: input, shape index: {}]
  %s4 = inlined_call_operand.vmem [shape: f32[1,128], index: 4, kind: input, shape index: {}]
  %s5 = inlined_call_operand.vmem [shape: f32[3,128,128], index: 5, kind: input, shape index: {}]
  %s6 = inlined_call_operand.vmem [shape: f32[1,128], index: 6, kind: input, shape index: {}]
  %s7 = inlined_call_operand.vmem [shape: f32[3,128,128], index: 7, kind: input, shape index: {}]
  %s8 = inlined_call_operand.vmem [shape: f32[1,128], index: 8, kind: input, shape index: {}]
  %s9 = inlined_call_operand.vmem [shape: f32[3,128,64], index: 9, kind: input, shape index: {}]
  %s10 = inlined_call_operand.vmem [shape: f32[1,64], index: 10, kind: input, shape index: {}]
  %s11 = inlined_call_operand.vmem [shape: f32[2,128], index: 11, kind: input, shape index: {}]
  %s12 = inlined_call_operand.vmem [shape: f32[2,128], index: 12, kind: input, shape index: {}]
  %s13 = inlined_call_operand.vmem [shape: f32[2,64], index: 13, kind: input, shape index: {}]
  %s14 = inlined_call_operand.vmem [shape: f32[128,128], index: 14, kind: input, shape index: {}]
  %s15 = inlined_call_operand.vmem [shape: f32[64,64], index: 15, kind: input, shape index: {}]
  %s16 = inlined_call_operand.vmem [shape: f32[16,64], index: 16, kind: output, shape index: {}]
  %s17 = sld [smem:[#allocation0]]
  $region74: #{downsampling_block_2d.1} parent=0
    _
  %s19 = ssub.s32 1, %s17
  %s20 = scalar_select 0, %s19, %s17
  // Predicated region
  $region2: #{downsampling_block_2d.1} parent=0 // pred_check
    _
  $region3: #{downsampling_block_2d.1} parent=0 // pred_check_branch
    %22 = sbr.rel (0) target = $region5
  $region4: #{downsampling_block_2d.1} parent=0 // pred_region
    _
  $region5: #{downsampling_block_2d.1} parent=0 // pred_fallthru
    _
  // Predicated region
  $region6: #{downsampling_block_2d.1} parent=0 // pred_check
    _
  $region7: #{downsampling_block_2d.1} parent=0 // pred_check_branch
    %24 = sbr.rel (0) target = $region9
  $region8: #{downsampling_block_2d.1} parent=0 // pred_region
    _
  $region9: #{downsampling_block_2d.1} parent=0 // pred_fallthru
    _
  // Predicated region
  $region10: #{downsampling_block_2d.1} parent=0 // pred_check
    _
  $region11: #{downsampling_block_2d.1} parent=0 // pred_check_branch
    %26 = sbr.rel (0) target = $region13
  $region12: #{downsampling_block_2d.1} parent=0 // pred_region
    _
  $region13: #{downsampling_block_2d.1} parent=0 // pred_fallthru
    _
  // Predicated region
  $region14: #{downsampling_block_2d.1} parent=0 // pred_check
    _
  $region15: #{downsampling_block_2d.1} parent=0 // pred_check_branch
    %28 = sbr.rel (0) target = $region17
  $region16: #{downsampling_block_2d.1} parent=0 // pred_region
    _
  $region17: #{downsampling_block_2d.1} parent=0 // pred_fallthru
    _
  // Predicated region
  $region18: #{downsampling_block_2d.1} parent=0 // pred_check
    _
  $region19: #{downsampling_block_2d.1} parent=0 // pred_check_branch
    %30 = sbr.rel (0) target = $region21
  $region20: #{downsampling_block_2d.1} parent=0 // pred_region
    _
  $region21: #{downsampling_block_2d.1} parent=0 // pred_fallthru
    _
  // Predicated region
  $region22: #{downsampling_block_2d.1} parent=0 // pred_check
    _
  $region23: #{downsampling_block_2d.1} parent=0 // pred_check_branch
    %32 = sbr.rel (0) target = $region25
  $region24: #{downsampling_block_2d.1} parent=0 // pred_region
    _
  $region25: #{downsampling_block_2d.1} parent=0 // pred_fallthru
    _
  // Predicated region
  $region26: #{downsampling_block_2d.1} parent=0 // pred_check
    _
  $region27: #{downsampling_block_2d.1} parent=0 // pred_check_branch
    %34 = sbr.rel (0) target = $region29
  $region28: #{downsampling_block_2d.1} parent=0 // pred_region
    _
  $region29: #{downsampling_block_2d.1} parent=0 // pred_fallthru
    _
  // Predicated region
  $region30: #{downsampling_block_2d.1} parent=0 // pred_check
    _
  $region31: #{downsampling_block_2d.1} parent=0 // pred_check_branch
    %36 = sbr.rel (0) target = $region33
  $region32: #{downsampling_block_2d.1} parent=0 // pred_region
    _
  $region33: #{downsampling_block_2d.1} parent=0 // pred_fallthru
    _
  // Predicated region
  $region34: #{downsampling_block_2d.1} parent=0 // pred_check
    _
  $region35: #{downsampling_block_2d.1} parent=0 // pred_check_branch
    %38 = sbr.rel (0) target = $region37
  $region36: #{downsampling_block_2d.1} parent=0 // pred_region
    _
  $region37: #{downsampling_block_2d.1} parent=0 // pred_fallthru
    _
  // Predicated region
  $region38: #{downsampling_block_2d.1} parent=0 // pred_check
    _
  $region39: #{downsampling_block_2d.1} parent=0 // pred_check_branch
    %40 = sbr.rel (0) target = $region41
  $region40: #{downsampling_block_2d.1} parent=0 // pred_region
    _
  $region41: #{downsampling_block_2d.1} parent=0 // pred_fallthru
    _
  // Predicated region
  $region42: #{downsampling_block_2d.1} parent=0 // pred_check
    _
  $region43: #{downsampling_block_2d.1} parent=0 // pred_check_branch
    %42 = sbr.rel (0) target = $region45
  $region44: #{downsampling_block_2d.1} parent=0 // pred_region
    _
  $region45: #{downsampling_block_2d.1} parent=0 // pred_fallthru
    _
  // Predicated region
  $region46: #{downsampling_block_2d.1} parent=0 // pred_check
    _
  $region47: #{downsampling_block_2d.1} parent=0 // pred_check_branch
    %44 = sbr.rel (0) target = $region49
  $region48: #{downsampling_block_2d.1} parent=0 // pred_region
    _
  $region49: #{downsampling_block_2d.1} parent=0 // pred_fallthru
    _
  // Predicated region
  $region50: #{downsampling_block_2d.1} parent=0 // pred_check
    _
  $region51: #{downsampling_block_2d.1} parent=0 // pred_check_branch
    %46 = sbr.rel (0) target = $region53
  $region52: #{downsampling_block_2d.1} parent=0 // pred_region
    _
  $region53: #{downsampling_block_2d.1} parent=0 // pred_fallthru
    _
  // Predicated region
  $region54: #{downsampling_block_2d.1} parent=0 // pred_check
    _
  $region55: #{downsampling_block_2d.1} parent=0 // pred_check_branch
    %48 = sbr.rel (0) target = $region57
  $region56: #{downsampling_block_2d.1} parent=0 // pred_region
    _
  $region57: #{downsampling_block_2d.1} parent=0 // pred_fallthru
    _
  // Predicated region
  $region58: #{downsampling_block_2d.1} parent=0 // pred_check
    _
  $region59: #{downsampling_block_2d.1} parent=0 // pred_check_branch
    %50 = sbr.rel (0) target = $region61
  $region60: #{downsampling_block_2d.1} parent=0 // pred_region
    _
  $region61: #{downsampling_block_2d.1} parent=0 // pred_fallthru
    _
  // Predicated region
  $region62: #{downsampling_block_2d.1} parent=0 // pred_check
    _
  $region63: #{downsampling_block_2d.1} parent=0 // pred_check_branch
    %52 = sbr.rel (0) target = $region65
  $region64: #{downsampling_block_2d.1} parent=0 // pred_region
    _
  $region65: #{downsampling_block_2d.1} parent=0 // pred_fallthru
    _
  %v53 = vld [vmem:[%s0] sm:$0xff]
  %v54 = vld [vmem:[%s0 + $0x8] sm:$0xff]
  %v55 = vld [vmem:[%s0 + $0x10] sm:$0xff]
  %v56 = vld [vmem:[%s0 + $0x18] sm:$0xff]
  %v57 = vld [vmem:[%s4] sm:$0x1]
  %v58 = vld [vmem:[%s1] sm:$0xff]
  %v59 = vld [vmem:[%s1 + $0x8] sm:$0xff]
  %v60 = vld [vmem:[%s1 + $0x10] sm:$0xff]
  %v61 = vld [vmem:[%s1 + $0x18] sm:$0xff]
  %vm62 = vcmask 261120
  %v64 = vsel %vm62, %v58, 0
  %v67 = vsel %vm62, %v59, 0
  %v70 = vsel %vm62, %v60, 0
  %v73 = vsel %vm62, %v61, 0
  %75 = vmatpush.msra.mxu0 0.0
  %76 = vmatpush.msra.mxu0 0.0
  %77 = vmatpush.msra.mxu0 0.0
  %78 = vmatpush.msra.mxu0 0.0
  %79 = vmatpush.msra.mxu0 0.0
  %80 = vmatpush.msra.mxu0 0.0
  %81 = vmatpush.msra.mxu0 0.0
  %82 = vmatpush.msra.mxu0 0.0
  %83 = vmatpush.msra.mxu0 0.0
  %84 = vmatpush.msra.mxu0 0.0
  %85 = vmatpush.msra.mxu0 0.0
  %86 = vmatpush.msra.mxu0 0.0
  %87 = vmatpush.msra.mxu0 %v56
  %88 = vmatpush.msra.mxu0 %v55
  %89 = vmatpush.msra.mxu0 %v54
  %90 = vmatpush.msra.mxu0 %v53
  %91 = vmatmul.f32.gmra.mxu0 %v64
  %v92 = vpop.f32.mrf.mxu0
  %v93 = vadd.f32 0.0, %v92
  %94 = vmatmul.f32.gmra.mxu0 %v67
  %v95 = vpop.f32.mrf.mxu0
  %v96 = vadd.f32 0.0, %v95
  %97 = vmatmul.f32.gmra.mxu0 %v70
  %v98 = vpop.f32.mrf.mxu0
  %v99 = vadd.f32 0.0, %v98
  %100 = vmatmul.f32.gmra.mxu0 %v73
  %v101 = vpop.f32.mrf.mxu0
  %v102 = vadd.f32 0.0, %v101
  %103 = vdwg.mxu0
  %v104 = vld [vmem:[%s3] sm:$0xff]
  %v105 = vld [vmem:[%s3 + $0x8] sm:$0xff]
  %v106 = vld [vmem:[%s3 + $0x10] sm:$0xff]
  %v107 = vld [vmem:[%s3 + $0x18] sm:$0xff]
  %v108 = vld [vmem:[%s3 + $0x20] sm:$0xff]
  %v109 = vld [vmem:[%s3 + $0x28] sm:$0xff]
  %v110 = vld [vmem:[%s3 + $0x30] sm:$0xff]
  %v111 = vld [vmem:[%s3 + $0x38] sm:$0xff]
  %vm112 = vcmask 523264
  %v114 = vsel %vm112, %v93, 0
  %v117 = vsel %vm112, %v96, 0
  %v120 = vsel %vm112, %v99, 0
  %v123 = vsel %vm112, %v102, 0
  %125 = vmatpush.msra.mxu0 0.0
  %126 = vmatpush.msra.mxu0 0.0
  %127 = vmatpush.msra.mxu0 0.0
  %128 = vmatpush.msra.mxu0 0.0
  %129 = vmatpush.msra.mxu0 0.0
  %130 = vmatpush.msra.mxu0 0.0
  %131 = vmatpush.msra.mxu0 0.0
  %132 = vmatpush.msra.mxu0 0.0
  %133 = vmatpush.msra.mxu0 %v111
  %134 = vmatpush.msra.mxu0 %v110
  %135 = vmatpush.msra.mxu0 %v109
  %136 = vmatpush.msra.mxu0 %v108
  %137 = vmatpush.msra.mxu0 %v107
  %138 = vmatpush.msra.mxu0 %v106
  %139 = vmatpush.msra.mxu0 %v105
  %140 = vmatpush.msra.mxu0 %v104
  %141 = vmatmul.f32.gmra.mxu0 %v114
  %v142 = vpop.f32.mrf.mxu0
  %v143 = vadd.f32 0.0, %v142
  %144 = vmatmul.f32.gmra.mxu0 %v117
  %v145 = vpop.f32.mrf.mxu0
  %v146 = vadd.f32 0.0, %v145
  %147 = vmatmul.f32.gmra.mxu0 %v120
  %v148 = vpop.f32.mrf.mxu0
  %v149 = vadd.f32 0.0, %v148
  %150 = vmatmul.f32.gmra.mxu0 %v123
  %v151 = vpop.f32.mrf.mxu0
  %v152 = vadd.f32 0.0, %v151
  %153 = vdwg.mxu0
  %v155 = vperm.slane %v57, 0
  %v157 = vadd.f32 %v155, %v143
  %v158 = vadd.f32 %v155, %v146
  %v159 = vadd.f32 %v155, %v149
  %v160 = vadd.f32 %v155, %v152
  %s161 = scalar_lea.vmem %s1, 32
  %v162 = vld [vmem:[%s161] sm:$0xff]
  %v163 = vld [vmem:[%s161 + $0x8] sm:$0xff]
  %v164 = vld [vmem:[%s161 + $0x10] sm:$0xff]
  %v165 = vld [vmem:[%s161 + $0x18] sm:$0xff]
  %v167 = vsel %vm62, %v162, 0
  %v170 = vsel %vm62, %v163, 0
  %v173 = vsel %vm62, %v164, 0
  %v176 = vsel %vm62, %v165, 0
  %178 = vmatpush.msra.mxu0 0.0
  %179 = vmatpush.msra.mxu0 0.0
  %180 = vmatpush.msra.mxu0 0.0
  %181 = vmatpush.msra.mxu0 0.0
  %182 = vmatpush.msra.mxu0 0.0
  %183 = vmatpush.msra.mxu0 0.0
  %184 = vmatpush.msra.mxu0 0.0
  %185 = vmatpush.msra.mxu0 0.0
  %186 = vmatpush.msra.mxu0 0.0
  %187 = vmatpush.msra.mxu0 0.0
  %188 = vmatpush.msra.mxu0 0.0
  %189 = vmatpush.msra.mxu0 0.0
  %190 = vmatpush.msra.mxu0 %v56
  %191 = vmatpush.msra.mxu0 %v55
  %192 = vmatpush.msra.mxu0 %v54
  %193 = vmatpush.msra.mxu0 %v53
  %194 = vmatmul.f32.gmra.mxu0 %v167
  %v195 = vpop.f32.mrf.mxu0
  %v196 = vadd.f32 0.0, %v195
  %197 = vmatmul.f32.gmra.mxu0 %v170
  %v198 = vpop.f32.mrf.mxu0
  %v199 = vadd.f32 0.0, %v198
  %200 = vmatmul.f32.gmra.mxu0 %v173
  %v201 = vpop.f32.mrf.mxu0
  %v202 = vadd.f32 0.0, %v201
  %203 = vmatmul.f32.gmra.mxu0 %v176
  %v204 = vpop.f32.mrf.mxu0
  %v205 = vadd.f32 0.0, %v204
  %206 = vdwg.mxu0
  %s207 = scalar_lea.vmem %s3, 64
  %v208 = vld [vmem:[%s207] sm:$0xff]
  %v209 = vld [vmem:[%s207 + $0x8] sm:$0xff]
  %v210 = vld [vmem:[%s207 + $0x10] sm:$0xff]
  %v211 = vld [vmem:[%s207 + $0x18] sm:$0xff]
  %v212 = vld [vmem:[%s207 + $0x20] sm:$0xff]
  %v213 = vld [vmem:[%s207 + $0x28] sm:$0xff]
  %v214 = vld [vmem:[%s207 + $0x30] sm:$0xff]
  %v215 = vld [vmem:[%s207 + $0x38] sm:$0xff]
  %v217 = vsel %vm112, %v196, 0
  %v220 = vsel %vm112, %v199, 0
  %v223 = vsel %vm112, %v202, 0
  %v226 = vsel %vm112, %v205, 0
  %228 = vmatpush.msra.mxu0 0.0
  %229 = vmatpush.msra.mxu0 0.0
  %230 = vmatpush.msra.mxu0 0.0
  %231 = vmatpush.msra.mxu0 0.0
  %232 = vmatpush.msra.mxu0 0.0
  %233 = vmatpush.msra.mxu0 0.0
  %234 = vmatpush.msra.mxu0 0.0
  %235 = vmatpush.msra.mxu0 0.0
  %236 = vmatpush.msra.mxu0 %v215
  %237 = vmatpush.msra.mxu0 %v214
  %238 = vmatpush.msra.mxu0 %v213
  %239 = vmatpush.msra.mxu0 %v212
  %240 = vmatpush.msra.mxu0 %v211
  %241 = vmatpush.msra.mxu0 %v210
  %242 = vmatpush.msra.mxu0 %v209
  %243 = vmatpush.msra.mxu0 %v208
  %244 = vmatmul.f32.gmra.mxu0 %v217
  %v245 = vpop.f32.mrf.mxu0
  %v246 = vadd.f32 0.0, %v245
  %247 = vmatmul.f32.gmra.mxu0 %v220
  %v248 = vpop.f32.mrf.mxu0
  %v249 = vadd.f32 0.0, %v248
  %250 = vmatmul.f32.gmra.mxu0 %v223
  %v251 = vpop.f32.mrf.mxu0
  %v252 = vadd.f32 0.0, %v251
  %253 = vmatmul.f32.gmra.mxu0 %v226
  %v254 = vpop.f32.mrf.mxu0
  %v255 = vadd.f32 0.0, %v254
  %256 = vdwg.mxu0
  %v257 = vadd.f32 %v157, %v246
  %v258 = vadd.f32 %v158, %v249
  %v259 = vadd.f32 %v159, %v252
  %v260 = vadd.f32 %v160, %v255
  %s261 = scalar_lea.vmem %s1, 64
  %v262 = vld [vmem:[%s261] sm:$0xff]
  %v263 = vld [vmem:[%s261 + $0x8] sm:$0xff]
  %v264 = vld [vmem:[%s261 + $0x10] sm:$0xff]
  %v265 = vld [vmem:[%s261 + $0x18] sm:$0xff]
  %v267 = vsel %vm62, %v262, 0
  %v270 = vsel %vm62, %v263, 0
  %v273 = vsel %vm62, %v264, 0
  %v276 = vsel %vm62, %v265, 0
  %278 = vmatpush.msra.mxu0 0.0
  %279 = vmatpush.msra.mxu0 0.0
  %280 = vmatpush.msra.mxu0 0.0
  %281 = vmatpush.msra.mxu0 0.0
  %282 = vmatpush.msra.mxu0 0.0
  %283 = vmatpush.msra.mxu0 0.0
  %284 = vmatpush.msra.mxu0 0.0
  %285 = vmatpush.msra.mxu0 0.0
  %286 = vmatpush.msra.mxu0 0.0
  %287 = vmatpush.msra.mxu0 0.0
  %288 = vmatpush.msra.mxu0 0.0
  %289 = vmatpush.msra.mxu0 0.0
  %290 = vmatpush.msra.mxu0 %v56
  %291 = vmatpush.msra.mxu0 %v55
  %292 = vmatpush.msra.mxu0 %v54
  %293 = vmatpush.msra.mxu0 %v53
  %294 = vmatmul.f32.gmra.mxu0 %v267
  %v295 = vpop.f32.mrf.mxu0
  %v296 = vadd.f32 0.0, %v295
  %297 = vmatmul.f32.gmra.mxu0 %v270
  %v298 = vpop.f32.mrf.mxu0
  %v299 = vadd.f32 0.0, %v298
  %300 = vmatmul.f32.gmra.mxu0 %v273
  %v301 = vpop.f32.mrf.mxu0
  %v302 = vadd.f32 0.0, %v301
  %303 = vmatmul.f32.gmra.mxu0 %v276
  %v304 = vpop.f32.mrf.mxu0
  %v305 = vadd.f32 0.0, %v304
  %306 = vdwg.mxu0
  %s307 = scalar_lea.vmem %s3, 128
  %v308 = vld [vmem:[%s307] sm:$0xff]
  %v309 = vld [vmem:[%s307 + $0x8] sm:$0xff]
  %v310 = vld [vmem:[%s307 + $0x10] sm:$0xff]
  %v311 = vld [vmem:[%s307 + $0x18] sm:$0xff]
  %v312 = vld [vmem:[%s307 + $0x20] sm:$0xff]
  %v313 = vld [vmem:[%s307 + $0x28] sm:$0xff]
  %v314 = vld [vmem:[%s307 + $0x30] sm:$0xff]
  %v315 = vld [vmem:[%s307 + $0x38] sm:$0xff]
  %v317 = vsel %vm112, %v296, 0
  %v320 = vsel %vm112, %v299, 0
  %v323 = vsel %vm112, %v302, 0
  %v326 = vsel %vm112, %v305, 0
  %328 = vmatpush.msra.mxu0 0.0
  %329 = vmatpush.msra.mxu0 0.0
  %330 = vmatpush.msra.mxu0 0.0
  %331 = vmatpush.msra.mxu0 0.0
  %332 = vmatpush.msra.mxu0 0.0
  %333 = vmatpush.msra.mxu0 0.0
  %334 = vmatpush.msra.mxu0 0.0
  %335 = vmatpush.msra.mxu0 0.0
  %336 = vmatpush.msra.mxu0 %v315
  %337 = vmatpush.msra.mxu0 %v314
  %338 = vmatpush.msra.mxu0 %v313
  %339 = vmatpush.msra.mxu0 %v312
  %340 = vmatpush.msra.mxu0 %v311
  %341 = vmatpush.msra.mxu0 %v310
  %342 = vmatpush.msra.mxu0 %v309
  %343 = vmatpush.msra.mxu0 %v308
  %344 = vmatmul.f32.gmra.mxu0 %v317
  %v345 = vpop.f32.mrf.mxu0
  %v346 = vadd.f32 0.0, %v345
  %347 = vmatmul.f32.gmra.mxu0 %v320
  %v348 = vpop.f32.mrf.mxu0
  %v349 = vadd.f32 0.0, %v348
  %350 = vmatmul.f32.gmra.mxu0 %v323
  %v351 = vpop.f32.mrf.mxu0
  %v352 = vadd.f32 0.0, %v351
  %353 = vmatmul.f32.gmra.mxu0 %v326
  %v354 = vpop.f32.mrf.mxu0
  %v355 = vadd.f32 0.0, %v354
  %356 = vdwg.mxu0
  %v357 = vadd.f32 %v257, %v346
  %v358 = vadd.f32 %v258, %v349
  %v359 = vadd.f32 %v259, %v352
  %v360 = vadd.f32 %v260, %v355
  %vm361 = vcmp.gt.f32.partialorder %v357, 0.0
  %vm362 = vcmp.gt.f32.partialorder %v358, 0.0
  %vm363 = vcmp.gt.f32.partialorder %v359, 0.0
  %vm364 = vcmp.gt.f32.partialorder %v360, 0.0
  %v365 = vmul.f32 %v357, 1.442695
  %v366 = vpow.pop %v365
  %v367 = vmul.f32 %v358, 1.442695
  %v368 = vpow.pop %v367
  %v369 = vmul.f32 %v359, 1.442695
  %v370 = vpow.pop %v369
  %v371 = vmul.f32 %v360, 1.442695
  %v372 = vpow.pop %v371
  %v373 = vsub.f32 %v366, 1.0
  %v374 = vsub.f32 %v368, 1.0
  %v375 = vsub.f32 %v370, 1.0
  %v376 = vsub.f32 %v372, 1.0
  %v377 = vmul.f32 %v373, 1.6732632
  %v378 = vmul.f32 %v374, 1.6732632
  %v379 = vmul.f32 %v375, 1.6732632
  %v380 = vmul.f32 %v376, 1.6732632
  %v381 = vsel %vm361, %v357, %v377
  %v382 = vsel %vm362, %v358, %v378
  %v383 = vsel %vm363, %v359, %v379
  %v384 = vsel %vm364, %v360, %v380
  %v385 = vmul.f32 %v381, 1.050701
  %v386 = vmul.f32 %v382, 1.050701
  %v387 = vmul.f32 %v383, 1.050701
  %v388 = vmul.f32 %v384, 1.050701
  %v389 = vld [vmem:[%s14] sm:$0xff]
  %v390 = vld [vmem:[%s14 + $0x8] sm:$0xff]
  %v391 = vld [vmem:[%s14 + $0x10] sm:$0xff]
  %v392 = vld [vmem:[%s14 + $0x18] sm:$0xff]
  %v393 = vld [vmem:[%s14 + $0x20] sm:$0xff]
  %v394 = vld [vmem:[%s14 + $0x28] sm:$0xff]
  %v395 = vld [vmem:[%s14 + $0x30] sm:$0xff]
  %v396 = vld [vmem:[%s14 + $0x38] sm:$0xff]
  %v397 = vld [vmem:[%s14 + $0x40] sm:$0xff]
  %v398 = vld [vmem:[%s14 + $0x48] sm:$0xff]
  %v399 = vld [vmem:[%s14 + $0x50] sm:$0xff]
  %v400 = vld [vmem:[%s14 + $0x58] sm:$0xff]
  %v401 = vld [vmem:[%s14 + $0x60] sm:$0xff]
  %v402 = vld [vmem:[%s14 + $0x68] sm:$0xff]
  %v403 = vld [vmem:[%s14 + $0x70] sm:$0xff]
  %v404 = vld [vmem:[%s14 + $0x78] sm:$0xff]
  %v405 = vld [vmem:[%s11] sm:$0x3]
  %406 = vmatpush.msra.mxu0 %v404
  %407 = vmatpush.msra.mxu0 %v403
  %408 = vmatpush.msra.mxu0 %v402
  %409 = vmatpush.msra.mxu0 %v401
  %410 = vmatpush.msra.mxu0 %v400
  %411 = vmatpush.msra.mxu0 %v399
  %412 = vmatpush.msra.mxu0 %v398
  %413 = vmatpush.msra.mxu0 %v397
  %414 = vmatpush.msra.mxu0 %v396
  %415 = vmatpush.msra.mxu0 %v395
  %416 = vmatpush.msra.mxu0 %v394
  %417 = vmatpush.msra.mxu0 %v393
  %418 = vmatpush.msra.mxu0 %v392
  %419 = vmatpush.msra.mxu0 %v391
  %420 = vmatpush.msra.mxu0 %v390
  %421 = vmatpush.msra.mxu0 %v389
  %422 = vmatmul.f32.gmra.mxu0 %v385
  %v423 = vpop.f32.mrf.mxu0
  %v424 = vadd.f32 0.0, %v423
  %425 = vmatmul.f32.gmra.mxu0 %v386
  %v426 = vpop.f32.mrf.mxu0
  %v427 = vadd.f32 0.0, %v426
  %428 = vmatmul.f32.gmra.mxu0 %v387
  %v429 = vpop.f32.mrf.mxu0
  %v430 = vadd.f32 0.0, %v429
  %431 = vmatmul.f32.gmra.mxu0 %v388
  %v432 = vpop.f32.mrf.mxu0
  %v433 = vadd.f32 0.0, %v432
  %434 = vdwg.mxu0
  %v435 = vadd.f32 %v424, %v427
  %v436 = vadd.f32 %v435, %v430
  %v437 = vadd.f32 %v436, %v433
  %v438 = vrot.slane %v437, 4
  %v439 = vadd.f32 %v437, %v438
  %v440 = vrot.slane %v439, 2
  %v441 = vadd.f32 %v439, %v440
  %v442 = vrot.slane %v441, 1
  %v443 = vadd.f32 %v441, %v442
  %v444 = vsub.f32 %v385, %v443
  %v445 = vsub.f32 %v386, %v443
  %v446 = vsub.f32 %v387, %v443
  %v447 = vsub.f32 %v388, %v443
  %v448 = vmul.f32 %v444, %v444
  %v449 = vmul.f32 %v445, %v445
  %v450 = vmul.f32 %v446, %v446
  %v451 = vmul.f32 %v447, %v447
  %452 = vmatpush.msra.mxu0 %v404
  %453 = vmatpush.msra.mxu0 %v403
  %454 = vmatpush.msra.mxu0 %v402
  %455 = vmatpush.msra.mxu0 %v401
  %456 = vmatpush.msra.mxu0 %v400
  %457 = vmatpush.msra.mxu0 %v399
  %458 = vmatpush.msra.mxu0 %v398
  %459 = vmatpush.msra.mxu0 %v397
  %460 = vmatpush.msra.mxu0 %v396
  %461 = vmatpush.msra.mxu0 %v395
  %462 = vmatpush.msra.mxu0 %v394
  %463 = vmatpush.msra.mxu0 %v393
  %464 = vmatpush.msra.mxu0 %v392
  %465 = vmatpush.msra.mxu0 %v391
  %466 = vmatpush.msra.mxu0 %v390
  %467 = vmatpush.msra.mxu0 %v389
  %468 = vmatmul.f32.gmra.mxu0 %v448
  %v469 = vpop.f32.mrf.mxu0
  %v470 = vadd.f32 0.0, %v469
  %471 = vmatmul.f32.gmra.mxu0 %v449
  %v472 = vpop.f32.mrf.mxu0
  %v473 = vadd.f32 0.0, %v472
  %474 = vmatmul.f32.gmra.mxu0 %v450
  %v475 = vpop.f32.mrf.mxu0
  %v476 = vadd.f32 0.0, %v475
  %477 = vmatmul.f32.gmra.mxu0 %v451
  %v478 = vpop.f32.mrf.mxu0
  %v479 = vadd.f32 0.0, %v478
  %480 = vdwg.mxu0
  %v481 = vadd.f32 %v470, %v473
  %v482 = vadd.f32 %v481, %v476
  %v483 = vadd.f32 %v482, %v479
  %v484 = vrot.slane %v483, 4
  %v485 = vadd.f32 %v483, %v484
  %v486 = vrot.slane %v485, 2
  %v487 = vadd.f32 %v485, %v486
  %v488 = vrot.slane %v487, 1
  %v489 = vadd.f32 %v487, %v488
  %v490 = vadd.f32 %v489, 1e-05
  %v491 = vrsqrt.pop %v490
  %v492 = vmul.f32 %v491, %v490
  %v493 = vmul.f32 %v492, %v491
  %v494 = vmul.f32 0.5, %v493
  %v495 = vsub.f32 1.5, %v494
  %v496 = vmul.f32 %v491, %v495
  %vm497 = vweird.f32 %v490
  %vm498 = vweird.f32 %v491
  %vm499 = vmor %vm497, %vm498
  %v500 = vsel %vm499, %v491, %v496
  %v501 = vmul.f32 %v444, %v500
  %v502 = vmul.f32 %v445, %v500
  %v503 = vmul.f32 %v446, %v500
  %v504 = vmul.f32 %v447, %v500
  %v505 = vperm.slane %v405, 0
  %v506 = vmul.f32 %v501, %v505
  %v507 = vmul.f32 %v502, %v505
  %v508 = vmul.f32 %v503, %v505
  %v509 = vmul.f32 %v504, %v505
  %v510 = vperm.slane %v405, 1
  %v511 = vadd.f32 %v506, %v510
  %v512 = vadd.f32 %v507, %v510
  %v513 = vadd.f32 %v508, %v510
  %v514 = vadd.f32 %v509, %v510
  %vm515 = vcmp.gt.f32.partialorder %v511, 0.0
  %vm516 = vcmp.gt.f32.partialorder %v512, 0.0
  %vm517 = vcmp.gt.f32.partialorder %v513, 0.0
  %vm518 = vcmp.gt.f32.partialorder %v514, 0.0
  %v519 = vmul.f32 %v511, 1.442695
  %v520 = vpow.pop %v519
  %v521 = vmul.f32 %v512, 1.442695
  %v522 = vpow.pop %v521
  %v523 = vmul.f32 %v513, 1.442695
  %v524 = vpow.pop %v523
  %v525 = vmul.f32 %v514, 1.442695
  %v526 = vpow.pop %v525
  %v527 = vsub.f32 %v520, 1.0
  %v528 = vsub.f32 %v522, 1.0
  %v529 = vsub.f32 %v524, 1.0
  %v530 = vsub.f32 %v526, 1.0
  %v531 = vmul.f32 %v527, 1.6732632
  %v532 = vmul.f32 %v528, 1.6732632
  %v533 = vmul.f32 %v529, 1.6732632
  %v534 = vmul.f32 %v530, 1.6732632
  %v535 = vsel %vm515, %v511, %v531
  %v536 = vsel %vm516, %v512, %v532
  %v537 = vsel %vm517, %v513, %v533
  %v538 = vsel %vm518, %v514, %v534
  %v539 = vmul.f32 %v535, 1.050701
  %v540 = vmul.f32 %v536, 1.050701
  %v541 = vmul.f32 %v537, 1.050701
  %v542 = vmul.f32 %v538, 1.050701
  %v543 = vld [vmem:[%s6] sm:$0x1]
  %544 = vmatpush.msra.mxu0 0.0
  %545 = vmatpush.msra.mxu0 0.0
  %546 = vmatpush.msra.mxu0 0.0
  %547 = vmatpush.msra.mxu0 0.0
  %548 = vmatpush.msra.mxu0 0.0
  %549 = vmatpush.msra.mxu0 0.0
  %550 = vmatpush.msra.mxu0 0.0
  %551 = vmatpush.msra.mxu0 0.0
  %552 = vmatpush.msra.mxu0 0.0
  %553 = vmatpush.msra.mxu0 0.0
  %554 = vmatpush.msra.mxu0 0.0
  %555 = vmatpush.msra.mxu0 0.0
  %556 = vmatpush.msra.mxu0 %v542
  %557 = vmatpush.msra.mxu0 %v541
  %558 = vmatpush.msra.mxu0 %v540
  %559 = vmatpush.msra.mxu0 %v539
  %560 = vmatmul.f32.gmra.mxu0 %v64
  %v561 = vpop.f32.mrf.mxu0
  %v562 = vadd.f32 0.0, %v561
  %563 = vmatmul.f32.gmra.mxu0 %v67
  %v564 = vpop.f32.mrf.mxu0
  %v565 = vadd.f32 0.0, %v564
  %566 = vmatmul.f32.gmra.mxu0 %v70
  %v567 = vpop.f32.mrf.mxu0
  %v568 = vadd.f32 0.0, %v567
  %569 = vmatmul.f32.gmra.mxu0 %v73
  %v570 = vpop.f32.mrf.mxu0
  %v571 = vadd.f32 0.0, %v570
  %572 = vdwg.mxu0
  %v573 = vld [vmem:[%s5] sm:$0xff]
  %v574 = vld [vmem:[%s5 + $0x8] sm:$0xff]
  %v575 = vld [vmem:[%s5 + $0x10] sm:$0xff]
  %v576 = vld [vmem:[%s5 + $0x18] sm:$0xff]
  %v577 = vld [vmem:[%s5 + $0x20] sm:$0xff]
  %v578 = vld [vmem:[%s5 + $0x28] sm:$0xff]
  %v579 = vld [vmem:[%s5 + $0x30] sm:$0xff]
  %v580 = vld [vmem:[%s5 + $0x38] sm:$0xff]
  %v581 = vld [vmem:[%s5 + $0x40] sm:$0xff]
  %v582 = vld [vmem:[%s5 + $0x48] sm:$0xff]
  %v583 = vld [vmem:[%s5 + $0x50] sm:$0xff]
  %v584 = vld [vmem:[%s5 + $0x58] sm:$0xff]
  %v585 = vld [vmem:[%s5 + $0x60] sm:$0xff]
  %v586 = vld [vmem:[%s5 + $0x68] sm:$0xff]
  %v587 = vld [vmem:[%s5 + $0x70] sm:$0xff]
  %v588 = vld [vmem:[%s5 + $0x78] sm:$0xff]
  %589 = vmatpush.msra.mxu0 %v588
  %590 = vmatpush.msra.mxu0 %v587
  %591 = vmatpush.msra.mxu0 %v586
  %592 = vmatpush.msra.mxu0 %v585
  %593 = vmatpush.msra.mxu0 %v584
  %594 = vmatpush.msra.mxu0 %v583
  %595 = vmatpush.msra.mxu0 %v582
  %596 = vmatpush.msra.mxu0 %v581
  %597 = vmatpush.msra.mxu0 %v580
  %598 = vmatpush.msra.mxu0 %v579
  %599 = vmatpush.msra.mxu0 %v578
  %600 = vmatpush.msra.mxu0 %v577
  %601 = vmatpush.msra.mxu0 %v576
  %602 = vmatpush.msra.mxu0 %v575
  %603 = vmatpush.msra.mxu0 %v574
  %604 = vmatpush.msra.mxu0 %v573
  %605 = vmatmul.f32.gmra.mxu0 %v562
  %v606 = vpop.f32.mrf.mxu0
  %v607 = vadd.f32 0.0, %v606
  %608 = vmatmul.f32.gmra.mxu0 %v565
  %v609 = vpop.f32.mrf.mxu0
  %v610 = vadd.f32 0.0, %v609
  %611 = vmatmul.f32.gmra.mxu0 %v568
  %v612 = vpop.f32.mrf.mxu0
  %v613 = vadd.f32 0.0, %v612
  %614 = vmatmul.f32.gmra.mxu0 %v571
  %v615 = vpop.f32.mrf.mxu0
  %v616 = vadd.f32 0.0, %v615
  %617 = vdwg.mxu0
  %v619 = vperm.slane %v543, 0
  %v621 = vadd.f32 %v619, %v607
  %v622 = vadd.f32 %v619, %v610
  %v623 = vadd.f32 %v619, %v613
  %v624 = vadd.f32 %v619, %v616
  %625 = vmatpush.msra.mxu0 0.0
  %626 = vmatpush.msra.mxu0 0.0
  %627 = vmatpush.msra.mxu0 0.0
  %628 = vmatpush.msra.mxu0 0.0
  %629 = vmatpush.msra.mxu0 0.0
  %630 = vmatpush.msra.mxu0 0.0
  %631 = vmatpush.msra.mxu0 0.0
  %632 = vmatpush.msra.mxu0 0.0
  %633 = vmatpush.msra.mxu0 0.0
  %634 = vmatpush.msra.mxu0 0.0
  %635 = vmatpush.msra.mxu0 0.0
  %636 = vmatpush.msra.mxu0 0.0
  %637 = vmatpush.msra.mxu0 %v542
  %638 = vmatpush.msra.mxu0 %v541
  %639 = vmatpush.msra.mxu0 %v540
  %640 = vmatpush.msra.mxu0 %v539
  %641 = vmatmul.f32.gmra.mxu0 %v167
  %v642 = vpop.f32.mrf.mxu0
  %v643 = vadd.f32 0.0, %v642
  %644 = vmatmul.f32.gmra.mxu0 %v170
  %v645 = vpop.f32.mrf.mxu0
  %v646 = vadd.f32 0.0, %v645
  %647 = vmatmul.f32.gmra.mxu0 %v173
  %v648 = vpop.f32.mrf.mxu0
  %v649 = vadd.f32 0.0, %v648
  %650 = vmatmul.f32.gmra.mxu0 %v176
  %v651 = vpop.f32.mrf.mxu0
  %v652 = vadd.f32 0.0, %v651
  %653 = vdwg.mxu0
  %s654 = scalar_lea.vmem %s5, 128
  %v655 = vld [vmem:[%s654] sm:$0xff]
  %v656 = vld [vmem:[%s654 + $0x8] sm:$0xff]
  %v657 = vld [vmem:[%s654 + $0x10] sm:$0xff]
  %v658 = vld [vmem:[%s654 + $0x18] sm:$0xff]
  %v659 = vld [vmem:[%s654 + $0x20] sm:$0xff]
  %v660 = vld [vmem:[%s654 + $0x28] sm:$0xff]
  %v661 = vld [vmem:[%s654 + $0x30] sm:$0xff]
  %v662 = vld [vmem:[%s654 + $0x38] sm:$0xff]
  %v663 = vld [vmem:[%s654 + $0x40] sm:$0xff]
  %v664 = vld [vmem:[%s654 + $0x48] sm:$0xff]
  %v665 = vld [vmem:[%s654 + $0x50] sm:$0xff]
  %v666 = vld [vmem:[%s654 + $0x58] sm:$0xff]
  %v667 = vld [vmem:[%s654 + $0x60] sm:$0xff]
  %v668 = vld [vmem:[%s654 + $0x68] sm:$0xff]
  %v669 = vld [vmem:[%s654 + $0x70] sm:$0xff]
  %v670 = vld [vmem:[%s654 + $0x78] sm:$0xff]
  %671 = vmatpush.msra.mxu0 %v670
  %672 = vmatpush.msra.mxu0 %v669
  %673 = vmatpush.msra.mxu0 %v668
  %674 = vmatpush.msra.mxu0 %v667
  %675 = vmatpush.msra.mxu0 %v666
  %676 = vmatpush.msra.mxu0 %v665
  %677 = vmatpush.msra.mxu0 %v664
  %678 = vmatpush.msra.mxu0 %v663
  %679 = vmatpush.msra.mxu0 %v662
  %680 = vmatpush.msra.mxu0 %v661
  %681 = vmatpush.msra.mxu0 %v660
  %682 = vmatpush.msra.mxu0 %v659
  %683 = vmatpush.msra.mxu0 %v658
  %684 = vmatpush.msra.mxu0 %v657
  %685 = vmatpush.msra.mxu0 %v656
  %686 = vmatpush.msra.mxu0 %v655
  %687 = vmatmul.f32.gmra.mxu0 %v643
  %v688 = vpop.f32.mrf.mxu0
  %v689 = vadd.f32 0.0, %v688
  %690 = vmatmul.f32.gmra.mxu0 %v646
  %v691 = vpop.f32.mrf.mxu0
  %v692 = vadd.f32 0.0, %v691
  %693 = vmatmul.f32.gmra.mxu0 %v649
  %v694 = vpop.f32.mrf.mxu0
  %v695 = vadd.f32 0.0, %v694
  %696 = vmatmul.f32.gmra.mxu0 %v652
  %v697 = vpop.f32.mrf.mxu0
  %v698 = vadd.f32 0.0, %v697
  %699 = vdwg.mxu0
  %v700 = vadd.f32 %v621, %v689
  %v701 = vadd.f32 %v622, %v692
  %v702 = vadd.f32 %v623, %v695
  %v703 = vadd.f32 %v624, %v698
  %704 = vmatpush.msra.mxu0 0.0
  %705 = vmatpush.msra.mxu0 0.0
  %706 = vmatpush.msra.mxu0 0.0
  %707 = vmatpush.msra.mxu0 0.0
  %708 = vmatpush.msra.mxu0 0.0
  %709 = vmatpush.msra.mxu0 0.0
  %710 = vmatpush.msra.mxu0 0.0
  %711 = vmatpush.msra.mxu0 0.0
  %712 = vmatpush.msra.mxu0 0.0
  %713 = vmatpush.msra.mxu0 0.0
  %714 = vmatpush.msra.mxu0 0.0
  %715 = vmatpush.msra.mxu0 0.0
  %716 = vmatpush.msra.mxu0 %v542
  %717 = vmatpush.msra.mxu0 %v541
  %718 = vmatpush.msra.mxu0 %v540
  %719 = vmatpush.msra.mxu0 %v539
  %720 = vmatmul.f32.gmra.mxu0 %v267
  %v721 = vpop.f32.mrf.mxu0
  %v722 = vadd.f32 0.0, %v721
  %723 = vmatmul.f32.gmra.mxu0 %v270
  %v724 = vpop.f32.mrf.mxu0
  %v725 = vadd.f32 0.0, %v724
  %726 = vmatmul.f32.gmra.mxu0 %v273
  %v727 = vpop.f32.mrf.mxu0
  %v728 = vadd.f32 0.0, %v727
  %729 = vmatmul.f32.gmra.mxu0 %v276
  %v730 = vpop.f32.mrf.mxu0
  %v731 = vadd.f32 0.0, %v730
  %732 = vdwg.mxu0
  %s733 = scalar_lea.vmem %s5, 256
  %v734 = vld [vmem:[%s733] sm:$0xff]
  %v735 = vld [vmem:[%s733 + $0x8] sm:$0xff]
  %v736 = vld [vmem:[%s733 + $0x10] sm:$0xff]
  %v737 = vld [vmem:[%s733 + $0x18] sm:$0xff]
  %v738 = vld [vmem:[%s733 + $0x20] sm:$0xff]
  %v739 = vld [vmem:[%s733 + $0x28] sm:$0xff]
  %v740 = vld [vmem:[%s733 + $0x30] sm:$0xff]
  %v741 = vld [vmem:[%s733 + $0x38] sm:$0xff]
  %v742 = vld [vmem:[%s733 + $0x40] sm:$0xff]
  %v743 = vld [vmem:[%s733 + $0x48] sm:$0xff]
  %v744 = vld [vmem:[%s733 + $0x50] sm:$0xff]
  %v745 = vld [vmem:[%s733 + $0x58] sm:$0xff]
  %v746 = vld [vmem:[%s733 + $0x60] sm:$0xff]
  %v747 = vld [vmem:[%s733 + $0x68] sm:$0xff]
  %v748 = vld [vmem:[%s733 + $0x70] sm:$0xff]
  %v749 = vld [vmem:[%s733 + $0x78] sm:$0xff]
  %750 = vmatpush.msra.mxu0 %v749
  %751 = vmatpush.msra.mxu0 %v748
  %752 = vmatpush.msra.mxu0 %v747
  %753 = vmatpush.msra.mxu0 %v746
  %754 = vmatpush.msra.mxu0 %v745
  %755 = vmatpush.msra.mxu0 %v744
  %756 = vmatpush.msra.mxu0 %v743
  %757 = vmatpush.msra.mxu0 %v742
  %758 = vmatpush.msra.mxu0 %v741
  %759 = vmatpush.msra.mxu0 %v740
  %760 = vmatpush.msra.mxu0 %v739
  %761 = vmatpush.msra.mxu0 %v738
  %762 = vmatpush.msra.mxu0 %v737
  %763 = vmatpush.msra.mxu0 %v736
  %764 = vmatpush.msra.mxu0 %v735
  %765 = vmatpush.msra.mxu0 %v734
  %766 = vmatmul.f32.gmra.mxu0 %v722
  %v767 = vpop.f32.mrf.mxu0
  %v768 = vadd.f32 0.0, %v767
  %769 = vmatmul.f32.gmra.mxu0 %v725
  %v770 = vpop.f32.mrf.mxu0
  %v771 = vadd.f32 0.0, %v770
  %772 = vmatmul.f32.gmra.mxu0 %v728
  %v773 = vpop.f32.mrf.mxu0
  %v774 = vadd.f32 0.0, %v773
  %775 = vmatmul.f32.gmra.mxu0 %v731
  %v776 = vpop.f32.mrf.mxu0
  %v777 = vadd.f32 0.0, %v776
  %778 = vdwg.mxu0
  %v779 = vadd.f32 %v700, %v768
  %v780 = vadd.f32 %v701, %v771
  %v781 = vadd.f32 %v702, %v774
  %v782 = vadd.f32 %v703, %v777
  %v783 = vld [vmem:[%s12] sm:$0x3]
  %784 = vmatpush.msra.mxu0 %v404
  %785 = vmatpush.msra.mxu0 %v403
  %786 = vmatpush.msra.mxu0 %v402
  %787 = vmatpush.msra.mxu0 %v401
  %788 = vmatpush.msra.mxu0 %v400
  %789 = vmatpush.msra.mxu0 %v399
  %790 = vmatpush.msra.mxu0 %v398
  %791 = vmatpush.msra.mxu0 %v397
  %792 = vmatpush.msra.mxu0 %v396
  %793 = vmatpush.msra.mxu0 %v395
  %794 = vmatpush.msra.mxu0 %v394
  %795 = vmatpush.msra.mxu0 %v393
  %796 = vmatpush.msra.mxu0 %v392
  %797 = vmatpush.msra.mxu0 %v391
  %798 = vmatpush.msra.mxu0 %v390
  %799 = vmatpush.msra.mxu0 %v389
  %800 = vmatmul.f32.gmra.mxu0 %v779
  %v801 = vpop.f32.mrf.mxu0
  %v802 = vadd.f32 0.0, %v801
  %803 = vmatmul.f32.gmra.mxu0 %v780
  %v804 = vpop.f32.mrf.mxu0
  %v805 = vadd.f32 0.0, %v804
  %806 = vmatmul.f32.gmra.mxu0 %v781
  %v807 = vpop.f32.mrf.mxu0
  %v808 = vadd.f32 0.0, %v807
  %809 = vmatmul.f32.gmra.mxu0 %v782
  %v810 = vpop.f32.mrf.mxu0
  %v811 = vadd.f32 0.0, %v810
  %812 = vdwg.mxu0
  %v813 = vadd.f32 %v802, %v805
  %v814 = vadd.f32 %v813, %v808
  %v815 = vadd.f32 %v814, %v811
  %v816 = vrot.slane %v815, 4
  %v817 = vadd.f32 %v815, %v816
  %v818 = vrot.slane %v817, 2
  %v819 = vadd.f32 %v817, %v818
  %v820 = vrot.slane %v819, 1
  %v821 = vadd.f32 %v819, %v820
  %v822 = vsub.f32 %v779, %v821
  %v823 = vsub.f32 %v780, %v821
  %v824 = vsub.f32 %v781, %v821
  %v825 = vsub.f32 %v782, %v821
  %v826 = vmul.f32 %v822, %v822
  %v827 = vmul.f32 %v823, %v823
  %v828 = vmul.f32 %v824, %v824
  %v829 = vmul.f32 %v825, %v825
  %830 = vmatpush.msra.mxu0 %v404
  %831 = vmatpush.msra.mxu0 %v403
  %832 = vmatpush.msra.mxu0 %v402
  %833 = vmatpush.msra.mxu0 %v401
  %834 = vmatpush.msra.mxu0 %v400
  %835 = vmatpush.msra.mxu0 %v399
  %836 = vmatpush.msra.mxu0 %v398
  %837 = vmatpush.msra.mxu0 %v397
  %838 = vmatpush.msra.mxu0 %v396
  %839 = vmatpush.msra.mxu0 %v395
  %840 = vmatpush.msra.mxu0 %v394
  %841 = vmatpush.msra.mxu0 %v393
  %842 = vmatpush.msra.mxu0 %v392
  %843 = vmatpush.msra.mxu0 %v391
  %844 = vmatpush.msra.mxu0 %v390
  %845 = vmatpush.msra.mxu0 %v389
  %846 = vmatmul.f32.gmra.mxu0 %v826
  %v847 = vpop.f32.mrf.mxu0
  %v848 = vadd.f32 0.0, %v847
  %849 = vmatmul.f32.gmra.mxu0 %v827
  %v850 = vpop.f32.mrf.mxu0
  %v851 = vadd.f32 0.0, %v850
  %852 = vmatmul.f32.gmra.mxu0 %v828
  %v853 = vpop.f32.mrf.mxu0
  %v854 = vadd.f32 0.0, %v853
  %855 = vmatmul.f32.gmra.mxu0 %v829
  %v856 = vpop.f32.mrf.mxu0
  %v857 = vadd.f32 0.0, %v856
  %858 = vdwg.mxu0
  %v859 = vadd.f32 %v848, %v851
  %v860 = vadd.f32 %v859, %v854
  %v861 = vadd.f32 %v860, %v857
  %v862 = vrot.slane %v861, 4
  %v863 = vadd.f32 %v861, %v862
  %v864 = vrot.slane %v863, 2
  %v865 = vadd.f32 %v863, %v864
  %v866 = vrot.slane %v865, 1
  %v867 = vadd.f32 %v865, %v866
  %v868 = vadd.f32 %v867, 1e-05
  %v869 = vrsqrt.pop %v868
  %v870 = vmul.f32 %v869, %v868
  %v871 = vmul.f32 %v870, %v869
  %v872 = vmul.f32 0.5, %v871
  %v873 = vsub.f32 1.5, %v872
  %v874 = vmul.f32 %v869, %v873
  %vm875 = vweird.f32 %v868
  %vm876 = vweird.f32 %v869
  %vm877 = vmor %vm875, %vm876
  %v878 = vsel %vm877, %v869, %v874
  %v879 = vmul.f32 %v822, %v878
  %v880 = vmul.f32 %v823, %v878
  %v881 = vmul.f32 %v824, %v878
  %v882 = vmul.f32 %v825, %v878
  %v883 = vperm.slane %v783, 0
  %v884 = vmul.f32 %v879, %v883
  %v885 = vmul.f32 %v880, %v883
  %v886 = vmul.f32 %v881, %v883
  %v887 = vmul.f32 %v882, %v883
  %v888 = vperm.slane %v783, 1
  %v889 = vadd.f32 %v884, %v888
  %v890 = vadd.f32 %v885, %v888
  %v891 = vadd.f32 %v886, %v888
  %v892 = vadd.f32 %v887, %v888
  %vm893 = vcmp.gt.f32.partialorder %v889, 0.0
  %vm894 = vcmp.gt.f32.partialorder %v890, 0.0
  %vm895 = vcmp.gt.f32.partialorder %v891, 0.0
  %vm896 = vcmp.gt.f32.partialorder %v892, 0.0
  %v897 = vmul.f32 %v889, 1.442695
  %v898 = vpow.pop %v897
  %v899 = vmul.f32 %v890, 1.442695
  %v900 = vpow.pop %v899
  %v901 = vmul.f32 %v891, 1.442695
  %v902 = vpow.pop %v901
  %v903 = vmul.f32 %v892, 1.442695
  %v904 = vpow.pop %v903
  %v905 = vsub.f32 %v898, 1.0
  %v906 = vsub.f32 %v900, 1.0
  %v907 = vsub.f32 %v902, 1.0
  %v908 = vsub.f32 %v904, 1.0
  %v909 = vmul.f32 %v905, 1.6732632
  %v910 = vmul.f32 %v906, 1.6732632
  %v911 = vmul.f32 %v907, 1.6732632
  %v912 = vmul.f32 %v908, 1.6732632
  %v913 = vsel %vm893, %v889, %v909
  %v914 = vsel %vm894, %v890, %v910
  %v915 = vsel %vm895, %v891, %v911
  %v916 = vsel %vm896, %v892, %v912
  %v917 = vmul.f32 %v913, 1.050701
  %v918 = vmul.f32 %v914, 1.050701
  %v919 = vmul.f32 %v915, 1.050701
  %v920 = vmul.f32 %v916, 1.050701
  %v921 = vld [vmem:[%s8] sm:$0x1]
  %922 = vmatpush.msra.mxu0 0.0
  %923 = vmatpush.msra.mxu0 0.0
  %924 = vmatpush.msra.mxu0 0.0
  %925 = vmatpush.msra.mxu0 0.0
  %926 = vmatpush.msra.mxu0 0.0
  %927 = vmatpush.msra.mxu0 0.0
  %928 = vmatpush.msra.mxu0 0.0
  %929 = vmatpush.msra.mxu0 0.0
  %930 = vmatpush.msra.mxu0 0.0
  %931 = vmatpush.msra.mxu0 0.0
  %932 = vmatpush.msra.mxu0 0.0
  %933 = vmatpush.msra.mxu0 0.0
  %934 = vmatpush.msra.mxu0 %v920
  %935 = vmatpush.msra.mxu0 %v919
  %936 = vmatpush.msra.mxu0 %v918
  %937 = vmatpush.msra.mxu0 %v917
  %938 = vmatmul.f32.gmra.mxu0 %v64
  %v939 = vpop.f32.mrf.mxu0
  %v940 = vadd.f32 0.0, %v939
  %941 = vmatmul.f32.gmra.mxu0 %v67
  %v942 = vpop.f32.mrf.mxu0
  %v943 = vadd.f32 0.0, %v942
  %944 = vmatmul.f32.gmra.mxu0 %v70
  %v945 = vpop.f32.mrf.mxu0
  %v946 = vadd.f32 0.0, %v945
  %947 = vmatmul.f32.gmra.mxu0 %v73
  %v948 = vpop.f32.mrf.mxu0
  %v949 = vadd.f32 0.0, %v948
  %950 = vdwg.mxu0
  %v951 = vld [vmem:[%s7] sm:$0xff]
  %v952 = vld [vmem:[%s7 + $0x8] sm:$0xff]
  %v953 = vld [vmem:[%s7 + $0x10] sm:$0xff]
  %v954 = vld [vmem:[%s7 + $0x18] sm:$0xff]
  %v955 = vld [vmem:[%s7 + $0x20] sm:$0xff]
  %v956 = vld [vmem:[%s7 + $0x28] sm:$0xff]
  %v957 = vld [vmem:[%s7 + $0x30] sm:$0xff]
  %v958 = vld [vmem:[%s7 + $0x38] sm:$0xff]
  %v959 = vld [vmem:[%s7 + $0x40] sm:$0xff]
  %v960 = vld [vmem:[%s7 + $0x48] sm:$0xff]
  %v961 = vld [vmem:[%s7 + $0x50] sm:$0xff]
  %v962 = vld [vmem:[%s7 + $0x58] sm:$0xff]
  %v963 = vld [vmem:[%s7 + $0x60] sm:$0xff]
  %v964 = vld [vmem:[%s7 + $0x68] sm:$0xff]
  %v965 = vld [vmem:[%s7 + $0x70] sm:$0xff]
  %v966 = vld [vmem:[%s7 + $0x78] sm:$0xff]
  %967 = vmatpush.msra.mxu0 %v966
  %968 = vmatpush.msra.mxu0 %v965
  %969 = vmatpush.msra.mxu0 %v964
  %970 = vmatpush.msra.mxu0 %v963
  %971 = vmatpush.msra.mxu0 %v962
  %972 = vmatpush.msra.mxu0 %v961
  %973 = vmatpush.msra.mxu0 %v960
  %974 = vmatpush.msra.mxu0 %v959
  %975 = vmatpush.msra.mxu0 %v958
  %976 = vmatpush.msra.mxu0 %v957
  %977 = vmatpush.msra.mxu0 %v956
  %978 = vmatpush.msra.mxu0 %v955
  %979 = vmatpush.msra.mxu0 %v954
  %980 = vmatpush.msra.mxu0 %v953
  %981 = vmatpush.msra.mxu0 %v952
  %982 = vmatpush.msra.mxu0 %v951
  %983 = vmatmul.f32.gmra.mxu0 %v940
  %v984 = vpop.f32.mrf.mxu0
  %v985 = vadd.f32 0.0, %v984
  %986 = vmatmul.f32.gmra.mxu0 %v943
  %v987 = vpop.f32.mrf.mxu0
  %v988 = vadd.f32 0.0, %v987
  %989 = vmatmul.f32.gmra.mxu0 %v946
  %v990 = vpop.f32.mrf.mxu0
  %v991 = vadd.f32 0.0, %v990
  %992 = vmatmul.f32.gmra.mxu0 %v949
  %v993 = vpop.f32.mrf.mxu0
  %v994 = vadd.f32 0.0, %v993
  %995 = vdwg.mxu0
  %v997 = vperm.slane %v921, 0
  %v999 = vadd.f32 %v997, %v985
  %v1000 = vadd.f32 %v997, %v988
  %v1001 = vadd.f32 %v997, %v991
  %v1002 = vadd.f32 %v997, %v994
  %1003 = vmatpush.msra.mxu0 0.0
  %1004 = vmatpush.msra.mxu0 0.0
  %1005 = vmatpush.msra.mxu0 0.0
  %1006 = vmatpush.msra.mxu0 0.0
  %1007 = vmatpush.msra.mxu0 0.0
  %1008 = vmatpush.msra.mxu0 0.0
  %1009 = vmatpush.msra.mxu0 0.0
  %1010 = vmatpush.msra.mxu0 0.0
  %1011 = vmatpush.msra.mxu0 0.0
  %1012 = vmatpush.msra.mxu0 0.0
  %1013 = vmatpush.msra.mxu0 0.0
  %1014 = vmatpush.msra.mxu0 0.0
  %1015 = vmatpush.msra.mxu0 %v920
  %1016 = vmatpush.msra.mxu0 %v919
  %1017 = vmatpush.msra.mxu0 %v918
  %1018 = vmatpush.msra.mxu0 %v917
  %1019 = vmatmul.f32.gmra.mxu0 %v167
  %v1020 = vpop.f32.mrf.mxu0
  %v1021 = vadd.f32 0.0, %v1020
  %1022 = vmatmul.f32.gmra.mxu0 %v170
  %v1023 = vpop.f32.mrf.mxu0
  %v1024 = vadd.f32 0.0, %v1023
  %1025 = vmatmul.f32.gmra.mxu0 %v173
  %v1026 = vpop.f32.mrf.mxu0
  %v1027 = vadd.f32 0.0, %v1026
  %1028 = vmatmul.f32.gmra.mxu0 %v176
  %v1029 = vpop.f32.mrf.mxu0
  %v1030 = vadd.f32 0.0, %v1029
  %1031 = vdwg.mxu0
  %s1032 = scalar_lea.vmem %s7, 128
  %v1033 = vld [vmem:[%s1032] sm:$0xff]
  %v1034 = vld [vmem:[%s1032 + $0x8] sm:$0xff]
  %v1035 = vld [vmem:[%s1032 + $0x10] sm:$0xff]
  %v1036 = vld [vmem:[%s1032 + $0x18] sm:$0xff]
  %v1037 = vld [vmem:[%s1032 + $0x20] sm:$0xff]
  %v1038 = vld [vmem:[%s1032 + $0x28] sm:$0xff]
  %v1039 = vld [vmem:[%s1032 + $0x30] sm:$0xff]
  %v1040 = vld [vmem:[%s1032 + $0x38] sm:$0xff]
  %v1041 = vld [vmem:[%s1032 + $0x40] sm:$0xff]
  %v1042 = vld [vmem:[%s1032 + $0x48] sm:$0xff]
  %v1043 = vld [vmem:[%s1032 + $0x50] sm:$0xff]
  %v1044 = vld [vmem:[%s1032 + $0x58] sm:$0xff]
  %v1045 = vld [vmem:[%s1032 + $0x60] sm:$0xff]
  %v1046 = vld [vmem:[%s1032 + $0x68] sm:$0xff]
  %v1047 = vld [vmem:[%s1032 + $0x70] sm:$0xff]
  %v1048 = vld [vmem:[%s1032 + $0x78] sm:$0xff]
  %1049 = vmatpush.msra.mxu0 %v1048
  %1050 = vmatpush.msra.mxu0 %v1047
  %1051 = vmatpush.msra.mxu0 %v1046
  %1052 = vmatpush.msra.mxu0 %v1045
  %1053 = vmatpush.msra.mxu0 %v1044
  %1054 = vmatpush.msra.mxu0 %v1043
  %1055 = vmatpush.msra.mxu0 %v1042
  %1056 = vmatpush.msra.mxu0 %v1041
  %1057 = vmatpush.msra.mxu0 %v1040
  %1058 = vmatpush.msra.mxu0 %v1039
  %1059 = vmatpush.msra.mxu0 %v1038
  %1060 = vmatpush.msra.mxu0 %v1037
  %1061 = vmatpush.msra.mxu0 %v1036
  %1062 = vmatpush.msra.mxu0 %v1035
  %1063 = vmatpush.msra.mxu0 %v1034
  %1064 = vmatpush.msra.mxu0 %v1033
  %1065 = vmatmul.f32.gmra.mxu0 %v1021
  %v1066 = vpop.f32.mrf.mxu0
  %v1067 = vadd.f32 0.0, %v1066
  %1068 = vmatmul.f32.gmra.mxu0 %v1024
  %v1069 = vpop.f32.mrf.mxu0
  %v1070 = vadd.f32 0.0, %v1069
  %1071 = vmatmul.f32.gmra.mxu0 %v1027
  %v1072 = vpop.f32.mrf.mxu0
  %v1073 = vadd.f32 0.0, %v1072
  %1074 = vmatmul.f32.gmra.mxu0 %v1030
  %v1075 = vpop.f32.mrf.mxu0
  %v1076 = vadd.f32 0.0, %v1075
  %1077 = vdwg.mxu0
  %v1078 = vadd.f32 %v999, %v1067
  %v1079 = vadd.f32 %v1000, %v1070
  %v1080 = vadd.f32 %v1001, %v1073
  %v1081 = vadd.f32 %v1002, %v1076
  %1082 = vmatpush.msra.mxu0 0.0
  %1083 = vmatpush.msra.mxu0 0.0
  %1084 = vmatpush.msra.mxu0 0.0
  %1085 = vmatpush.msra.mxu0 0.0
  %1086 = vmatpush.msra.mxu0 0.0
  %1087 = vmatpush.msra.mxu0 0.0
  %1088 = vmatpush.msra.mxu0 0.0
  %1089 = vmatpush.msra.mxu0 0.0
  %1090 = vmatpush.msra.mxu0 0.0
  %1091 = vmatpush.msra.mxu0 0.0
  %1092 = vmatpush.msra.mxu0 0.0
  %1093 = vmatpush.msra.mxu0 0.0
  %1094 = vmatpush.msra.mxu0 %v920
  %1095 = vmatpush.msra.mxu0 %v919
  %1096 = vmatpush.msra.mxu0 %v918
  %1097 = vmatpush.msra.mxu0 %v917
  %1098 = vmatmul.f32.gmra.mxu0 %v267
  %v1099 = vpop.f32.mrf.mxu0
  %v1100 = vadd.f32 0.0, %v1099
  %1101 = vmatmul.f32.gmra.mxu0 %v270
  %v1102 = vpop.f32.mrf.mxu0
  %v1103 = vadd.f32 0.0, %v1102
  %1104 = vmatmul.f32.gmra.mxu0 %v273
  %v1105 = vpop.f32.mrf.mxu0
  %v1106 = vadd.f32 0.0, %v1105
  %1107 = vmatmul.f32.gmra.mxu0 %v276
  %v1108 = vpop.f32.mrf.mxu0
  %v1109 = vadd.f32 0.0, %v1108
  %1110 = vdwg.mxu0
  %s1111 = scalar_lea.vmem %s7, 256
  %v1112 = vld [vmem:[%s1111] sm:$0xff]
  %v1113 = vld [vmem:[%s1111 + $0x8] sm:$0xff]
  %v1114 = vld [vmem:[%s1111 + $0x10] sm:$0xff]
  %v1115 = vld [vmem:[%s1111 + $0x18] sm:$0xff]
  %v1116 = vld [vmem:[%s1111 + $0x20] sm:$0xff]
  %v1117 = vld [vmem:[%s1111 + $0x28] sm:$0xff]
  %v1118 = vld [vmem:[%s1111 + $0x30] sm:$0xff]
  %v1119 = vld [vmem:[%s1111 + $0x38] sm:$0xff]
  %v1120 = vld [vmem:[%s1111 + $0x40] sm:$0xff]
  %v1121 = vld [vmem:[%s1111 + $0x48] sm:$0xff]
  %v1122 = vld [vmem:[%s1111 + $0x50] sm:$0xff]
  %v1123 = vld [vmem:[%s1111 + $0x58] sm:$0xff]
  %v1124 = vld [vmem:[%s1111 + $0x60] sm:$0xff]
  %v1125 = vld [vmem:[%s1111 + $0x68] sm:$0xff]
  %v1126 = vld [vmem:[%s1111 + $0x70] sm:$0xff]
  %v1127 = vld [vmem:[%s1111 + $0x78] sm:$0xff]
  %1128 = vmatpush.msra.mxu0 %v1127
  %1129 = vmatpush.msra.mxu0 %v1126
  %1130 = vmatpush.msra.mxu0 %v1125
  %1131 = vmatpush.msra.mxu0 %v1124
  %1132 = vmatpush.msra.mxu0 %v1123
  %1133 = vmatpush.msra.mxu0 %v1122
  %1134 = vmatpush.msra.mxu0 %v1121
  %1135 = vmatpush.msra.mxu0 %v1120
  %1136 = vmatpush.msra.mxu0 %v1119
  %1137 = vmatpush.msra.mxu0 %v1118
  %1138 = vmatpush.msra.mxu0 %v1117
  %1139 = vmatpush.msra.mxu0 %v1116
  %1140 = vmatpush.msra.mxu0 %v1115
  %1141 = vmatpush.msra.mxu0 %v1114
  %1142 = vmatpush.msra.mxu0 %v1113
  %1143 = vmatpush.msra.mxu0 %v1112
  %1144 = vmatmul.f32.gmra.mxu0 %v1100
  %v1145 = vpop.f32.mrf.mxu0
  %v1146 = vadd.f32 0.0, %v1145
  %1147 = vmatmul.f32.gmra.mxu0 %v1103
  %v1148 = vpop.f32.mrf.mxu0
  %v1149 = vadd.f32 0.0, %v1148
  %1150 = vmatmul.f32.gmra.mxu0 %v1106
  %v1151 = vpop.f32.mrf.mxu0
  %v1152 = vadd.f32 0.0, %v1151
  %1153 = vmatmul.f32.gmra.mxu0 %v1109
  %v1154 = vpop.f32.mrf.mxu0
  %v1155 = vadd.f32 0.0, %v1154
  %1156 = vdwg.mxu0
  %v1157 = vadd.f32 %v1078, %v1146
  %v1158 = vadd.f32 %v1079, %v1149
  %v1159 = vadd.f32 %v1080, %v1152
  %v1160 = vadd.f32 %v1081, %v1155
  %v1161 = vadd.f32 %v385, %v1157
  %v1162 = vadd.f32 %v386, %v1158
  %v1163 = vadd.f32 %v387, %v1159
  %v1164 = vadd.f32 %v388, %v1160
  %v1165 = vld [vmem:[%s10] sm:$0x1]
  %v1166 = vld [vmem:[%s2] sm:$0xff]
  %v1167 = vld [vmem:[%s2 + $0x8] sm:$0xff]
  %v1169 = vsel %vm62, %v1166, 0
  %v1172 = vsel %vm62, %v1167, 0
  %1174 = vmatpush.msra.mxu0 0.0
  %1175 = vmatpush.msra.mxu0 0.0
  %1176 = vmatpush.msra.mxu0 0.0
  %1177 = vmatpush.msra.mxu0 0.0
  %1178 = vmatpush.msra.mxu0 0.0
  %1179 = vmatpush.msra.mxu0 0.0
  %1180 = vmatpush.msra.mxu0 0.0
  %1181 = vmatpush.msra.mxu0 0.0
  %1182 = vmatpush.msra.mxu0 0.0
  %1183 = vmatpush.msra.mxu0 0.0
  %1184 = vmatpush.msra.mxu0 0.0
  %1185 = vmatpush.msra.mxu0 0.0
  %1186 = vmatpush.msra.mxu0 %v1164
  %1187 = vmatpush.msra.mxu0 %v1163
  %1188 = vmatpush.msra.mxu0 %v1162
  %1189 = vmatpush.msra.mxu0 %v1161
  %1190 = vmatmul.f32.gmra.mxu0 %v1169
  %v1191 = vpop.f32.mrf.mxu0
  %v1192 = vadd.f32 0.0, %v1191
  %1193 = vmatmul.f32.gmra.mxu0 %v1172
  %v1194 = vpop.f32.mrf.mxu0
  %v1195 = vadd.f32 0.0, %v1194
  %1196 = vdwg.mxu0
  %v1197 = vld [vmem:[%s9] sm:$0xff]
  %v1198 = vld [vmem:[%s9 + $0x8] sm:$0xff]
  %v1199 = vld [vmem:[%s9 + $0x10] sm:$0xff]
  %v1200 = vld [vmem:[%s9 + $0x18] sm:$0xff]
  %v1201 = vld [vmem:[%s9 + $0x20] sm:$0xff]
  %v1202 = vld [vmem:[%s9 + $0x28] sm:$0xff]
  %v1203 = vld [vmem:[%s9 + $0x30] sm:$0xff]
  %v1204 = vld [vmem:[%s9 + $0x38] sm:$0xff]
  %v1205 = vld [vmem:[%s9 + $0x40] sm:$0xff]
  %v1206 = vld [vmem:[%s9 + $0x48] sm:$0xff]
  %v1207 = vld [vmem:[%s9 + $0x50] sm:$0xff]
  %v1208 = vld [vmem:[%s9 + $0x58] sm:$0xff]
  %v1209 = vld [vmem:[%s9 + $0x60] sm:$0xff]
  %v1210 = vld [vmem:[%s9 + $0x68] sm:$0xff]
  %v1211 = vld [vmem:[%s9 + $0x70] sm:$0xff]
  %v1212 = vld [vmem:[%s9 + $0x78] sm:$0xff]
  %1213 = vmatpush.msra.mxu0 %v1212
  %1214 = vmatpush.msra.mxu0 %v1211
  %1215 = vmatpush.msra.mxu0 %v1210
  %1216 = vmatpush.msra.mxu0 %v1209
  %1217 = vmatpush.msra.mxu0 %v1208
  %1218 = vmatpush.msra.mxu0 %v1207
  %1219 = vmatpush.msra.mxu0 %v1206
  %1220 = vmatpush.msra.mxu0 %v1205
  %1221 = vmatpush.msra.mxu0 %v1204
  %1222 = vmatpush.msra.mxu0 %v1203
  %1223 = vmatpush.msra.mxu0 %v1202
  %1224 = vmatpush.msra.mxu0 %v1201
  %1225 = vmatpush.msra.mxu0 %v1200
  %1226 = vmatpush.msra.mxu0 %v1199
  %1227 = vmatpush.msra.mxu0 %v1198
  %1228 = vmatpush.msra.mxu0 %v1197
  %1229 = vmatmul.f32.gmra.mxu0 %v1192
  %v1230 = vpop.f32.mrf.mxu0
  %v1231 = vadd.f32 0.0, %v1230
  %1232 = vmatmul.f32.gmra.mxu0 %v1195
  %v1233 = vpop.f32.mrf.mxu0
  %v1234 = vadd.f32 0.0, %v1233
  %1235 = vdwg.mxu0
  %v1237 = vperm.slane %v1165, 0
  %v1239 = vadd.f32 %v1237, %v1231
  %v1240 = vadd.f32 %v1237, %v1234
  %s1241 = scalar_lea.vmem %s2, 16
  %v1242 = vld [vmem:[%s1241] sm:$0xff]
  %v1243 = vld [vmem:[%s1241 + $0x8] sm:$0xff]
  %v1245 = vsel %vm62, %v1242, 0
  %v1248 = vsel %vm62, %v1243, 0
  %1250 = vmatpush.msra.mxu0 0.0
  %1251 = vmatpush.msra.mxu0 0.0
  %1252 = vmatpush.msra.mxu0 0.0
  %1253 = vmatpush.msra.mxu0 0.0
  %1254 = vmatpush.msra.mxu0 0.0
  %1255 = vmatpush.msra.mxu0 0.0
  %1256 = vmatpush.msra.mxu0 0.0
  %1257 = vmatpush.msra.mxu0 0.0
  %1258 = vmatpush.msra.mxu0 0.0
  %1259 = vmatpush.msra.mxu0 0.0
  %1260 = vmatpush.msra.mxu0 0.0
  %1261 = vmatpush.msra.mxu0 0.0
  %1262 = vmatpush.msra.mxu0 %v1164
  %1263 = vmatpush.msra.mxu0 %v1163
  %1264 = vmatpush.msra.mxu0 %v1162
  %1265 = vmatpush.msra.mxu0 %v1161
  %1266 = vmatmul.f32.gmra.mxu0 %v1245
  %v1267 = vpop.f32.mrf.mxu0
  %v1268 = vadd.f32 0.0, %v1267
  %1269 = vmatmul.f32.gmra.mxu0 %v1248
  %v1270 = vpop.f32.mrf.mxu0
  %v1271 = vadd.f32 0.0, %v1270
  %1272 = vdwg.mxu0
  %s1273 = scalar_lea.vmem %s9, 128
  %v1274 = vld [vmem:[%s1273] sm:$0xff]
  %v1275 = vld [vmem:[%s1273 + $0x8] sm:$0xff]
  %v1276 = vld [vmem:[%s1273 + $0x10] sm:$0xff]
  %v1277 = vld [vmem:[%s1273 + $0x18] sm:$0xff]
  %v1278 = vld [vmem:[%s1273 + $0x20] sm:$0xff]
  %v1279 = vld [vmem:[%s1273 + $0x28] sm:$0xff]
  %v1280 = vld [vmem:[%s1273 + $0x30] sm:$0xff]
  %v1281 = vld [vmem:[%s1273 + $0x38] sm:$0xff]
  %v1282 = vld [vmem:[%s1273 + $0x40] sm:$0xff]
  %v1283 = vld [vmem:[%s1273 + $0x48] sm:$0xff]
  %v1284 = vld [vmem:[%s1273 + $0x50] sm:$0xff]
  %v1285 = vld [vmem:[%s1273 + $0x58] sm:$0xff]
  %v1286 = vld [vmem:[%s1273 + $0x60] sm:$0xff]
  %v1287 = vld [vmem:[%s1273 + $0x68] sm:$0xff]
  %v1288 = vld [vmem:[%s1273 + $0x70] sm:$0xff]
  %v1289 = vld [vmem:[%s1273 + $0x78] sm:$0xff]
  %1290 = vmatpush.msra.mxu0 %v1289
  %1291 = vmatpush.msra.mxu0 %v1288
  %1292 = vmatpush.msra.mxu0 %v1287
  %1293 = vmatpush.msra.mxu0 %v1286
  %1294 = vmatpush.msra.mxu0 %v1285
  %1295 = vmatpush.msra.mxu0 %v1284
  %1296 = vmatpush.msra.mxu0 %v1283
  %1297 = vmatpush.msra.mxu0 %v1282
  %1298 = vmatpush.msra.mxu0 %v1281
  %1299 = vmatpush.msra.mxu0 %v1280
  %1300 = vmatpush.msra.mxu0 %v1279
  %1301 = vmatpush.msra.mxu0 %v1278
  %1302 = vmatpush.msra.mxu0 %v1277
  %1303 = vmatpush.msra.mxu0 %v1276
  %1304 = vmatpush.msra.mxu0 %v1275
  %1305 = vmatpush.msra.mxu0 %v1274
  %1306 = vmatmul.f32.gmra.mxu0 %v1268
  %v1307 = vpop.f32.mrf.mxu0
  %v1308 = vadd.f32 0.0, %v1307
  %1309 = vmatmul.f32.gmra.mxu0 %v1271
  %v1310 = vpop.f32.mrf.mxu0
  %v1311 = vadd.f32 0.0, %v1310
  %1312 = vdwg.mxu0
  %v1313 = vadd.f32 %v1239, %v1308
  %v1314 = vadd.f32 %v1240, %v1311
  %s1315 = scalar_lea.vmem %s2, 32
  %v1316 = vld [vmem:[%s1315] sm:$0xff]
  %v1317 = vld [vmem:[%s1315 + $0x8] sm:$0xff]
  %v1319 = vsel %vm62, %v1316, 0
  %v1322 = vsel %vm62, %v1317, 0
  %1324 = vmatpush.msra.mxu0 0.0
  %1325 = vmatpush.msra.mxu0 0.0
  %1326 = vmatpush.msra.mxu0 0.0
  %1327 = vmatpush.msra.mxu0 0.0
  %1328 = vmatpush.msra.mxu0 0.0
  %1329 = vmatpush.msra.mxu0 0.0
  %1330 = vmatpush.msra.mxu0 0.0
  %1331 = vmatpush.msra.mxu0 0.0
  %1332 = vmatpush.msra.mxu0 0.0
  %1333 = vmatpush.msra.mxu0 0.0
  %1334 = vmatpush.msra.mxu0 0.0
  %1335 = vmatpush.msra.mxu0 0.0
  %1336 = vmatpush.msra.mxu0 %v1164
  %1337 = vmatpush.msra.mxu0 %v1163
  %1338 = vmatpush.msra.mxu0 %v1162
  %1339 = vmatpush.msra.mxu0 %v1161
  %1340 = vmatmul.f32.gmra.mxu0 %v1319
  %v1341 = vpop.f32.mrf.mxu0
  %v1342 = vadd.f32 0.0, %v1341
  %1343 = vmatmul.f32.gmra.mxu0 %v1322
  %v1344 = vpop.f32.mrf.mxu0
  %v1345 = vadd.f32 0.0, %v1344
  %1346 = vdwg.mxu0
  %s1347 = scalar_lea.vmem %s9, 256
  %v1348 = vld [vmem:[%s1347] sm:$0xff]
  %v1349 = vld [vmem:[%s1347 + $0x8] sm:$0xff]
  %v1350 = vld [vmem:[%s1347 + $0x10] sm:$0xff]
  %v1351 = vld [vmem:[%s1347 + $0x18] sm:$0xff]
  %v1352 = vld [vmem:[%s1347 + $0x20] sm:$0xff]
  %v1353 = vld [vmem:[%s1347 + $0x28] sm:$0xff]
  %v1354 = vld [vmem:[%s1347 + $0x30] sm:$0xff]
  %v1355 = vld [vmem:[%s1347 + $0x38] sm:$0xff]
  %v1356 = vld [vmem:[%s1347 + $0x40] sm:$0xff]
  %v1357 = vld [vmem:[%s1347 + $0x48] sm:$0xff]
  %v1358 = vld [vmem:[%s1347 + $0x50] sm:$0xff]
  %v1359 = vld [vmem:[%s1347 + $0x58] sm:$0xff]
  %v1360 = vld [vmem:[%s1347 + $0x60] sm:$0xff]
  %v1361 = vld [vmem:[%s1347 + $0x68] sm:$0xff]
  %v1362 = vld [vmem:[%s1347 + $0x70] sm:$0xff]
  %v1363 = vld [vmem:[%s1347 + $0x78] sm:$0xff]
  %1364 = vmatpush.msra.mxu0 %v1363
  %1365 = vmatpush.msra.mxu0 %v1362
  %1366 = vmatpush.msra.mxu0 %v1361
  %1367 = vmatpush.msra.mxu0 %v1360
  %1368 = vmatpush.msra.mxu0 %v1359
  %1369 = vmatpush.msra.mxu0 %v1358
  %1370 = vmatpush.msra.mxu0 %v1357
  %1371 = vmatpush.msra.mxu0 %v1356
  %1372 = vmatpush.msra.mxu0 %v1355
  %1373 = vmatpush.msra.mxu0 %v1354
  %1374 = vmatpush.msra.mxu0 %v1353
  %1375 = vmatpush.msra.mxu0 %v1352
  %1376 = vmatpush.msra.mxu0 %v1351
  %1377 = vmatpush.msra.mxu0 %v1350
  %1378 = vmatpush.msra.mxu0 %v1349
  %1379 = vmatpush.msra.mxu0 %v1348
  %1380 = vmatmul.f32.gmra.mxu0 %v1342
  %v1381 = vpop.f32.mrf.mxu0
  %v1382 = vadd.f32 0.0, %v1381
  %1383 = vmatmul.f32.gmra.mxu0 %v1345
  %v1384 = vpop.f32.mrf.mxu0
  %v1385 = vadd.f32 0.0, %v1384
  %1386 = vdwg.mxu0
  %v1387 = vadd.f32 %v1313, %v1382
  %v1388 = vadd.f32 %v1314, %v1385
  %vm1389 = vcmp.gt.f32.partialorder %v1387, 0.0
  %vm1390 = vcmp.gt.f32.partialorder %v1388, 0.0
  %v1391 = vmul.f32 %v1387, 1.442695
  %v1392 = vpow.pop %v1391
  %v1393 = vmul.f32 %v1388, 1.442695
  %v1394 = vpow.pop %v1393
  %v1395 = vsub.f32 %v1392, 1.0
  %v1396 = vsub.f32 %v1394, 1.0
  %v1397 = vmul.f32 %v1395, 1.6732632
  %v1398 = vmul.f32 %v1396, 1.6732632
  %v1399 = vsel %vm1389, %v1387, %v1397
  %v1400 = vsel %vm1390, %v1388, %v1398
  %v1401 = vmul.f32 %v1399, 1.050701
  %v1402 = vmul.f32 %v1400, 1.050701
  %v1403 = vld [vmem:[%s15] sm:$0xff]
  %v1404 = vld [vmem:[%s15 + $0x8] sm:$0xff]
  %v1405 = vld [vmem:[%s15 + $0x10] sm:$0xff]
  %v1406 = vld [vmem:[%s15 + $0x18] sm:$0xff]
  %v1407 = vld [vmem:[%s15 + $0x20] sm:$0xff]
  %v1408 = vld [vmem:[%s15 + $0x28] sm:$0xff]
  %v1409 = vld [vmem:[%s15 + $0x30] sm:$0xff]
  %v1410 = vld [vmem:[%s15 + $0x38] sm:$0xff]
  %v1411 = vld [vmem:[%s13] sm:$0x3]
  %v1413 = vsel %vm112, %v1401, 0
  %v1416 = vsel %vm112, %v1402, 0
  %1418 = vmatpush.msra.mxu0 0.0
  %1419 = vmatpush.msra.mxu0 0.0
  %1420 = vmatpush.msra.mxu0 0.0
  %1421 = vmatpush.msra.mxu0 0.0
  %1422 = vmatpush.msra.mxu0 0.0
  %1423 = vmatpush.msra.mxu0 0.0
  %1424 = vmatpush.msra.mxu0 0.0
  %1425 = vmatpush.msra.mxu0 0.0
  %1426 = vmatpush.msra.mxu0 %v1410
  %1427 = vmatpush.msra.mxu0 %v1409
  %1428 = vmatpush.msra.mxu0 %v1408
  %1429 = vmatpush.msra.mxu0 %v1407
  %1430 = vmatpush.msra.mxu0 %v1406
  %1431 = vmatpush.msra.mxu0 %v1405
  %1432 = vmatpush.msra.mxu0 %v1404
  %1433 = vmatpush.msra.mxu0 %v1403
  %1434 = vmatmul.f32.gmra.mxu0 %v1413
  %v1435 = vpop.f32.mrf.mxu0
  %v1436 = vadd.f32 0.0, %v1435
  %1437 = vmatmul.f32.gmra.mxu0 %v1416
  %v1438 = vpop.f32.mrf.mxu0
  %v1439 = vadd.f32 0.0, %v1438
  %1440 = vdwg.mxu0
  %v1441 = vsel %vm112, %v1436, 0.0
  %v1442 = vsel %vm112, %v1439, 0.0
  %v1443 = vadd.f32 %v1441, %v1442
  %v1444 = vrot.slane %v1443, 4
  %v1445 = vadd.f32 %v1443, %v1444
  %v1446 = vrot.slane %v1445, 2
  %v1447 = vadd.f32 %v1445, %v1446
  %v1448 = vrot.slane %v1447, 1
  %v1449 = vadd.f32 %v1447, %v1448
  %v1450 = vsub.f32 %v1401, %v1449
  %v1451 = vsub.f32 %v1402, %v1449
  %v1452 = vmul.f32 %v1450, %v1450
  %v1453 = vmul.f32 %v1451, %v1451
  %v1455 = vsel %vm112, %v1452, 0
  %v1458 = vsel %vm112, %v1453, 0
  %1460 = vmatpush.msra.mxu0 0.0
  %1461 = vmatpush.msra.mxu0 0.0
  %1462 = vmatpush.msra.mxu0 0.0
  %1463 = vmatpush.msra.mxu0 0.0
  %1464 = vmatpush.msra.mxu0 0.0
  %1465 = vmatpush.msra.mxu0 0.0
  %1466 = vmatpush.msra.mxu0 0.0
  %1467 = vmatpush.msra.mxu0 0.0
  %1468 = vmatpush.msra.mxu0 %v1410
  %1469 = vmatpush.msra.mxu0 %v1409
  %1470 = vmatpush.msra.mxu0 %v1408
  %1471 = vmatpush.msra.mxu0 %v1407
  %1472 = vmatpush.msra.mxu0 %v1406
  %1473 = vmatpush.msra.mxu0 %v1405
  %1474 = vmatpush.msra.mxu0 %v1404
  %1475 = vmatpush.msra.mxu0 %v1403
  %1476 = vmatmul.f32.gmra.mxu0 %v1455
  %v1477 = vpop.f32.mrf.mxu0
  %v1478 = vadd.f32 0.0, %v1477
  %1479 = vmatmul.f32.gmra.mxu0 %v1458
  %v1480 = vpop.f32.mrf.mxu0
  %v1481 = vadd.f32 0.0, %v1480
  %1482 = vdwg.mxu0
  %v1483 = vsel %vm112, %v1478, 0.0
  %v1484 = vsel %vm112, %v1481, 0.0
  %v1485 = vadd.f32 %v1483, %v1484
  %v1486 = vrot.slane %v1485, 4
  %v1487 = vadd.f32 %v1485, %v1486
  %v1488 = vrot.slane %v1487, 2
  %v1489 = vadd.f32 %v1487, %v1488
  %v1490 = vrot.slane %v1489, 1
  %v1491 = vadd.f32 %v1489, %v1490
  %v1492 = vadd.f32 %v1491, 1e-05
  %v1493 = vrsqrt.pop %v1492
  %v1494 = vmul.f32 %v1493, %v1492
  %v1495 = vmul.f32 %v1494, %v1493
  %v1496 = vmul.f32 0.5, %v1495
  %v1497 = vsub.f32 1.5, %v1496
  %v1498 = vmul.f32 %v1493, %v1497
  %vm1499 = vweird.f32 %v1492
  %vm1500 = vweird.f32 %v1493
  %vm1501 = vmor %vm1499, %vm1500
  %v1502 = vsel %vm1501, %v1493, %v1498
  %v1503 = vmul.f32 %v1450, %v1502
  %v1504 = vmul.f32 %v1451, %v1502
  %v1505 = vperm.slane %v1411, 0
  %v1506 = vmul.f32 %v1503, %v1505
  %v1507 = vmul.f32 %v1504, %v1505
  %v1508 = vperm.slane %v1411, 1
  %v1509 = vadd.f32 %v1506, %v1508
  %v1510 = vadd.f32 %v1507, %v1508
  %1511 = vst.msk [vmem:[%s16] sm:$0xff] %vm112, %v1509
  %1512 = vst.msk [vmem:[%s16 + $0x8] sm:$0xff] %vm112, %v1510
  // Predicated region
  $region66: #{downsampling_block_2d.1} parent=0 // pred_check
    _
  $region67: #{downsampling_block_2d.1} parent=0 // pred_check_branch
    %1514 = sbr.rel (0) target = $region69
  $region68: #{downsampling_block_2d.1} parent=0 // pred_region
    _
  $region69: #{downsampling_block_2d.1} parent=0 // pred_fallthru
    _
  // Predicated region
  $region70: #{downsampling_block_2d.1} parent=0 // pred_check
    _
  $region71: #{downsampling_block_2d.1} parent=0 // pred_check_branch
    %1516 = sbr.rel (0) target = $region73
  $region72: #{downsampling_block_2d.1} parent=0 // pred_region
    _
  $region73: #{downsampling_block_2d.1} parent=0 // pred_fallthru
    _

</llo_original>
